<compile_context>
chip_gen: v7x
topology: tpu7x:2x2x1
jax: 0.10.0
libtpu: 0.0.40
codegen_flags: <defaults>
</compile_context>

<pallas_src>
import math

import jax
import jax.numpy as jnp
from jax import lax
from jax.experimental import pallas as pl
from jax.experimental.pallas import tpu as pltpu

D_MODEL = 32
N_HEADS = 4
D_HEAD = D_MODEL // N_HEADS
SEQ = 8
BATCH = 2
BH = BATCH * N_HEADS
EPS = 1e-5
SCALE = D_HEAD ** (-0.5)

# ALiBi slopes: m_h = 1 / ((2^8)^(1/H))^(h+1)  -> 1/4, 1/16, 1/64, 1/256 (exact in f32)
_RATIO = (2.0 ** 8) ** (1.0 / N_HEADS)
SLOPES = tuple(1.0 / _RATIO ** (i + 1) for i in range(N_HEADS))


def _layernorm(x, w, b):
    mu = jnp.mean(x, axis=-1, keepdims=True)
    var = jnp.mean((x - mu) ** 2, axis=-1, keepdims=True)
    return (x - mu) * lax.rsqrt(var + EPS) * w + b


def _gelu_tanh(x):
    # GELU(approximate='tanh')
    c = jnp.asarray(math.sqrt(2.0 / math.pi), x.dtype)
    return 0.5 * x * (1.0 + jnp.tanh(c * (x + 0.044715 * x * x * x)))


def transformer_block_kernel(
    x_ref,      # (B*L, D)   activations, batch folded into rows
    wqkv_ref,   # (D, 3*D)   [Wq | Wk | Wv] lane-concatenated
    wo_ref,     # (D, D)     output projection
    wfc_ref,    # (D, 4D)
    wpr_ref,    # (4D, D)
    vec_ref,    # (8, 4D)    packed per-feature vectors (see pack_params)
    o_ref,      # (B*L, D)
):
    D = D_MODEL
    x = x_ref[...]                                           # (16, 32)
    vec = vec_ref[...]                                       # (8, 128)
    ln1w = vec[0:1, 0:D]
    ln1b = vec[0:1, D:2 * D]
    ln2w = vec[0:1, 2 * D:3 * D]
    ln2b = vec[0:1, 3 * D:4 * D]
    bqkv = vec[1:2, 0:3 * D]                                 # (1, 96)
    bo = vec[2:3, 0:D]                                       # (1, 32)
    bpr = vec[3:4, 0:D]                                      # (1, 32)
    bfc = vec[4:5, :]                                        # (1, 128)

    # ---------------- x = x + attn(ln_1(x)) ----------------
    xn = _layernorm(x, ln1w, ln1b)                           # (16, 32)

    # Single lane-packed QKV projection (one MXU push at 96/128 lane utilization).
    qkv = jnp.dot(xn, wqkv_ref[...],
                  preferred_element_type=jnp.float32) + bqkv  # (16, 96)
    q_all = qkv[:, 0:D]
    k_all = qkv[:, D:2 * D]
    v_all = qkv[:, 2 * D:3 * D]

    # Build head-batched (B*H, L, dh) views by static slicing (lane/sublane selects
    # riding the otherwise-idle XLU/VPU slots).
    def to_heads(t):
        parts = []
        for b in range(BATCH):
            blk = t[b * SEQ:(b + 1) * SEQ]                   # (L, D)
            for h in range(N_HEADS):
                parts.append(blk[:, h * D_HEAD:(h + 1) * D_HEAD])
        return jnp.stack(parts, axis=0)                      # (BH, L, dh)

    q = to_heads(q_all)
    k = to_heads(k_all)
    v = to_heads(v_all)

    # ALiBi bias generated in-kernel: pos[i, j] = j - i, scaled by per-head slope
    # (slopes are compile-time constants -> no operand DMA).
    pos = (lax.broadcasted_iota(jnp.int32, (SEQ, SEQ), 1)
           - lax.broadcasted_iota(jnp.int32, (SEQ, SEQ), 0)).astype(jnp.float32)
    alibi = jnp.stack(
        [SLOPES[h] * pos for _ in range(BATCH) for h in range(N_HEADS)], axis=0
    )                                                        # (BH, L, L)

    # Head-batched attention core.
    s = jnp.einsum("bld,bmd->blm", q, k,
                   preferred_element_type=jnp.float32) * SCALE + alibi
    s = s - jnp.max(s, axis=-1, keepdims=True)
    p = jnp.exp(s)
    p = p * pl.reciprocal(jnp.sum(p, axis=-1, keepdims=True), approx=True)
    ctx = jnp.einsum("blm,bmd->bld", p, v,
                     preferred_element_type=jnp.float32)     # (BH, L, dh)

    # Merge heads back to (B*L, H*dh) with lane concats, then one (16,32)@(32,32).
    rows = []
    for b in range(BATCH):
        rows.append(jnp.concatenate(
            [ctx[b * N_HEADS + h] for h in range(N_HEADS)], axis=-1))  # (L, D)
    ctx2 = jnp.concatenate(rows, axis=0)                     # (16, 32)

    attn = jnp.dot(ctx2, wo_ref[...],
                   preferred_element_type=jnp.float32) + bo  # (16, 32)
    x1 = x + attn

    # ---------------- x = x + mlp(ln_2(x)) ----------------
    xn2 = _layernorm(x1, ln2w, ln2b)
    hdn = jnp.dot(xn2, wfc_ref[...],
                  preferred_element_type=jnp.float32) + bfc  # (16, 128)
    hdn = _gelu_tanh(hdn)
    mlp = jnp.dot(hdn, wpr_ref[...],
                  preferred_element_type=jnp.float32) + bpr  # (16, 32)

    o_ref[...] = x1 + mlp


def pack_params(params):
    """One-time parameter packing (NOT on the per-call hot path)."""
    (ln1w, ln1b, wq, bq, wk, bk, wv, bv, wo, bo,
     ln2w, ln2b, wfc, bfc, wpr, bpr) = params
    D = D_MODEL
    wqkv = jnp.concatenate([wq, wk, wv], axis=1)             # (32, 96)
    bqkv = jnp.concatenate([bq, bk, bv], axis=1)             # (1, 96)
    vec = jnp.zeros((8, 4 * D), jnp.float32)
    vec = vec.at[0, 0:D].set(ln1w[0])
    vec = vec.at[0, D:2 * D].set(ln1b[0])
    vec = vec.at[0, 2 * D:3 * D].set(ln2w[0])
    vec = vec.at[0, 3 * D:4 * D].set(ln2b[0])
    vec = vec.at[1, 0:3 * D].set(bqkv[0])
    vec = vec.at[2, 0:D].set(bo[0])
    vec = vec.at[3, 0:D].set(bpr[0])
    vec = vec.at[4, :].set(bfc[0])
    return wqkv, wo, wfc, wpr, vec


@jax.jit
def transformer_block(x, wqkv, wo, wfc, wpr, vec):
    B, L, D = x.shape
    x2 = x.reshape(B * L, D)
    vmem = pl.BlockSpec(memory_space=pltpu.MemorySpace.VMEM)
    out2 = pl.pallas_call(
        transformer_block_kernel,
        out_shape=jax.ShapeDtypeStruct((B * L, D), jnp.float32),
        in_specs=[vmem] * 6,
        out_specs=vmem,
        cost_estimate=pl.CostEstimate(
            flops=450_000, transcendentals=2_600, bytes_accessed=56 * 1024),
    )(x2, wqkv, wo, wfc, wpr, vec)
    return out2.reshape(B, L, D)


# ----------------------- pure-JAX reference (for validation) -----------------------
def reference_block(x, params, alibi):
    (ln1w, ln1b, wq, bq, wk, bk, wv, bv, wo, bo,
     ln2w, ln2b, wfc, bfc, wpr, bpr) = params
    B, L, D = x.shape

    def ln(t, w, b):
        mu = jnp.mean(t, axis=-1, keepdims=True)
        var = jnp.mean((t - mu) ** 2, axis=-1, keepdims=True)
        return (t - mu) / jnp.sqrt(var + EPS) * w[0] + b[0]

    xn = ln(x, ln1w, ln1b)
    q = xn @ wq + bq[0]
    k = xn @ wk + bk[0]
    v = xn @ wv + bv[0]
    q = q.reshape(B, L, N_HEADS, D_HEAD).transpose(0, 2, 1, 3)
    k = k.reshape(B, L, N_HEADS, D_HEAD).transpose(0, 2, 1, 3)
    v = v.reshape(B, L, N_HEADS, D_HEAD).transpose(0, 2, 1, 3)
    s = jnp.einsum("bhld,bhmd->bhlm", q, k) * SCALE + alibi[None]
    p = jax.nn.softmax(s, axis=-1)
    o = jnp.einsum("bhlm,bhmd->bhld", p, v).transpose(0, 2, 1, 3).reshape(B, L, D)
    o = o @ wo + bo[0]
    x1 = x + o

    xn2 = ln(x1, ln2w, ln2b)
    h = xn2 @ wfc + bfc[0]
    c = math.sqrt(2.0 / math.pi)
    h = 0.5 * h * (1.0 + jnp.tanh(c * (h + 0.044715 * h ** 3)))
    return x1 + h @ wpr + bpr[0]


if __name__ == "__main__":
    key = jax.random.PRNGKey(0)
    ks = jax.random.split(key, 16)

    def w(k, shape, scale=0.05):
        return (scale * jax.random.normal(k, shape)).astype(jnp.float32)

    # parameter order: ln1, q, k, v, out, ln2, fc, proj (weights stored as (in, out))
    params = (
        jnp.ones((1, D_MODEL), jnp.float32),               # ln1 weight
        jnp.zeros((1, D_MODEL), jnp.float32),              # ln1 bias
        w(ks[0], (D_MODEL, D_MODEL)), w(ks[1], (1, D_MODEL)),    # query
        w(ks[2], (D_MODEL, D_MODEL)), w(ks[3], (1, D_MODEL)),    # key
        w(ks[4], (D_MODEL, D_MODEL)), w(ks[5], (1, D_MODEL)),    # value
        w(ks[6], (D_MODEL, D_MODEL)), w(ks[7], (1, D_MODEL)),    # out proj
        jnp.ones((1, D_MODEL), jnp.float32),               # ln2 weight
        jnp.zeros((1, D_MODEL), jnp.float32),              # ln2 bias
        w(ks[8], (D_MODEL, 4 * D_MODEL)), w(ks[9], (1, 4 * D_MODEL)),   # mlp fc
        w(ks[10], (4 * D_MODEL, D_MODEL)), w(ks[11], (1, D_MODEL)),     # mlp proj
    )

    # ALiBi bias for the pure-JAX reference (kernel regenerates it internally).
    m = jnp.asarray(SLOPES, jnp.float32)[:, None, None]
    pos = (jnp.arange(SEQ)[None, :] - jnp.arange(SEQ)[:, None]).astype(jnp.float32)
    alibi = m * pos[None]                                    # (H, L, L)

    x = jax.random.normal(ks[12], (BATCH, SEQ, D_MODEL), jnp.float32)

    # One-time packing (off the hot path).
    wqkv, wo_p, wfc_p, wpr_p, vec = pack_params(params)

    out = transformer_block(x, wqkv, wo_p, wfc_p, wpr_p, vec)
    out = jax.block_until_ready(out)

    ref = reference_block(x, params, alibi)
    assert out.shape == (BATCH, SEQ, D_MODEL)
    # tolerance 2e-3: the in-kernel softmax uses pl.reciprocal(approx=True) (EUP).
    assert jnp.allclose(out, ref, atol=2e-3, rtol=2e-3), "mismatch vs reference"

    print("KERNEL_OK")
</pallas_src>

<mosaic_0001>
module attributes {stable_mosaic.version = 11 : i64} {
  func.func @transformer_block_kernel(%arg0: memref<16x32xf32, #tpu.memory_space<vmem>>, %arg1: memref<32x96xf32, #tpu.memory_space<vmem>>, %arg2: memref<32x32xf32, #tpu.memory_space<vmem>>, %arg3: memref<32x128xf32, #tpu.memory_space<vmem>>, %arg4: memref<128x32xf32, #tpu.memory_space<vmem>>, %arg5: memref<8x128xf32, #tpu.memory_space<vmem>>, %arg6: memref<16x32xf32, #tpu.memory_space<vmem>>) attributes {dimension_semantics = [], scalar_prefetch = 0 : i64, scratch_operands = 0 : i64, tpu.core_type = #tpu.core_type<tc>} {
    %c0 = arith.constant 0 : index
    %c0_0 = arith.constant 0 : index
    %0 = vector.load %arg0[%c0, %c0_0] : memref<16x32xf32, #tpu.memory_space<vmem>>, vector<16x32xf32>
    %c0_1 = arith.constant 0 : index
    %c0_2 = arith.constant 0 : index
    %1 = vector.load %arg5[%c0_1, %c0_2] : memref<8x128xf32, #tpu.memory_space<vmem>>, vector<8x128xf32>
    %2 = vector.extract_strided_slice %1 {offsets = [0, 0], sizes = [1, 32], strides = [1, 1]} : vector<8x128xf32> to vector<1x32xf32>
    %3 = vector.extract_strided_slice %1 {offsets = [0, 32], sizes = [1, 32], strides = [1, 1]} : vector<8x128xf32> to vector<1x32xf32>
    %4 = vector.extract_strided_slice %1 {offsets = [0, 64], sizes = [1, 32], strides = [1, 1]} : vector<8x128xf32> to vector<1x32xf32>
    %5 = vector.extract_strided_slice %1 {offsets = [0, 96], sizes = [1, 32], strides = [1, 1]} : vector<8x128xf32> to vector<1x32xf32>
    %6 = vector.extract_strided_slice %1 {offsets = [1, 0], sizes = [1, 96], strides = [1, 1]} : vector<8x128xf32> to vector<1x96xf32>
    %7 = vector.extract_strided_slice %1 {offsets = [2, 0], sizes = [1, 32], strides = [1, 1]} : vector<8x128xf32> to vector<1x32xf32>
    %8 = vector.extract_strided_slice %1 {offsets = [3, 0], sizes = [1, 32], strides = [1, 1]} : vector<8x128xf32> to vector<1x32xf32>
    %9 = vector.extract_strided_slice %1 {offsets = [4, 0], sizes = [1, 128], strides = [1, 1]} : vector<8x128xf32> to vector<1x128xf32>
    %cst = arith.constant dense<0.000000e+00> : vector<16xf32>
    %10 = vector.multi_reduction <add>, %0, %cst [1] : vector<16x32xf32> to vector<16xf32>
    %11 = vector.shape_cast %10 : vector<16xf32> to vector<16x1xf32>
    %cst_3 = arith.constant 3.200000e+01 : f32
    %12 = vector.broadcast %cst_3 : f32 to vector<16x1xf32>
    %13 = arith.divf %11, %12 : vector<16x1xf32>
    %14 = vector.broadcast %13 : vector<16x1xf32> to vector<16x32xf32>
    %15 = arith.subf %0, %14 : vector<16x32xf32>
    %16 = arith.mulf %15, %15 : vector<16x32xf32>
    %cst_4 = arith.constant dense<0.000000e+00> : vector<16xf32>
    %17 = vector.multi_reduction <add>, %16, %cst_4 [1] : vector<16x32xf32> to vector<16xf32>
    %18 = vector.shape_cast %17 : vector<16xf32> to vector<16x1xf32>
    %cst_5 = arith.constant 3.200000e+01 : f32
    %19 = vector.broadcast %cst_5 : f32 to vector<16x1xf32>
    %20 = arith.divf %18, %19 : vector<16x1xf32>
    %21 = vector.broadcast %13 : vector<16x1xf32> to vector<16x32xf32>
    %22 = arith.subf %0, %21 : vector<16x32xf32>
    %cst_6 = arith.constant 9.99999974E-6 : f32
    %23 = vector.broadcast %cst_6 : f32 to vector<16x1xf32>
    %24 = arith.addf %20, %23 : vector<16x1xf32>
    %25 = math.rsqrt %24 : vector<16x1xf32>
    %26 = vector.broadcast %25 : vector<16x1xf32> to vector<16x32xf32>
    %27 = arith.mulf %22, %26 : vector<16x32xf32>
    %28 = vector.broadcast %2 : vector<1x32xf32> to vector<16x32xf32>
    %29 = arith.mulf %27, %28 : vector<16x32xf32>
    %30 = vector.broadcast %3 : vector<1x32xf32> to vector<16x32xf32>
    %31 = arith.addf %29, %30 : vector<16x32xf32>
    %c0_7 = arith.constant 0 : index
    %c0_8 = arith.constant 0 : index
    %32 = vector.load %arg1[%c0_7, %c0_8] : memref<32x96xf32, #tpu.memory_space<vmem>>, vector<32x96xf32>
    %cst_9 = arith.constant dense<0.000000e+00> : vector<16x96xf32>
    %33 = tpu.matmul %31, %32, %cst_9 {dimension_numbers = #tpu.dot_dimension_numbers<[1], [0], [0], [1], [0, 0, 1, 1], [], []>} : vector<16x32xf32>, vector<32x96xf32>, vector<16x96xf32> -> vector<16x96xf32>
    %34 = vector.broadcast %6 : vector<1x96xf32> to vector<16x96xf32>
    %35 = arith.addf %33, %34 : vector<16x96xf32>
    %36 = vector.extract_strided_slice %35 {offsets = [0, 0], sizes = [16, 32], strides = [1, 1]} : vector<16x96xf32> to vector<16x32xf32>
    %37 = vector.extract_strided_slice %35 {offsets = [0, 32], sizes = [16, 32], strides = [1, 1]} : vector<16x96xf32> to vector<16x32xf32>
    %38 = vector.extract_strided_slice %35 {offsets = [0, 64], sizes = [16, 32], strides = [1, 1]} : vector<16x96xf32> to vector<16x32xf32>
    %39 = vector.extract_strided_slice %36 {offsets = [0, 0], sizes = [8, 32], strides = [1, 1]} : vector<16x32xf32> to vector<8x32xf32>
    %40 = vector.extract_strided_slice %39 {offsets = [0, 0], sizes = [8, 8], strides = [1, 1]} : vector<8x32xf32> to vector<8x8xf32>
    %41 = vector.extract_strided_slice %39 {offsets = [0, 8], sizes = [8, 8], strides = [1, 1]} : vector<8x32xf32> to vector<8x8xf32>
    %42 = vector.extract_strided_slice %39 {offsets = [0, 16], sizes = [8, 8], strides = [1, 1]} : vector<8x32xf32> to vector<8x8xf32>
    %43 = vector.extract_strided_slice %39 {offsets = [0, 24], sizes = [8, 8], strides = [1, 1]} : vector<8x32xf32> to vector<8x8xf32>
    %44 = vector.extract_strided_slice %36 {offsets = [8, 0], sizes = [8, 32], strides = [1, 1]} : vector<16x32xf32> to vector<8x32xf32>
    %45 = vector.extract_strided_slice %44 {offsets = [0, 0], sizes = [8, 8], strides = [1, 1]} : vector<8x32xf32> to vector<8x8xf32>
    %46 = vector.extract_strided_slice %44 {offsets = [0, 8], sizes = [8, 8], strides = [1, 1]} : vector<8x32xf32> to vector<8x8xf32>
    %47 = vector.extract_strided_slice %44 {offsets = [0, 16], sizes = [8, 8], strides = [1, 1]} : vector<8x32xf32> to vector<8x8xf32>
    %48 = vector.extract_strided_slice %44 {offsets = [0, 24], sizes = [8, 8], strides = [1, 1]} : vector<8x32xf32> to vector<8x8xf32>
    %49 = vector.shape_cast %40 : vector<8x8xf32> to vector<1x8x8xf32>
    %50 = vector.shape_cast %41 : vector<8x8xf32> to vector<1x8x8xf32>
    %51 = vector.shape_cast %42 : vector<8x8xf32> to vector<1x8x8xf32>
    %52 = vector.shape_cast %43 : vector<8x8xf32> to vector<1x8x8xf32>
    %53 = vector.shape_cast %45 : vector<8x8xf32> to vector<1x8x8xf32>
    %54 = vector.shape_cast %46 : vector<8x8xf32> to vector<1x8x8xf32>
    %55 = vector.shape_cast %47 : vector<8x8xf32> to vector<1x8x8xf32>
    %56 = vector.shape_cast %48 : vector<8x8xf32> to vector<1x8x8xf32>
    %57 = tpu.concatenate %49, %50, %51, %52, %53, %54, %55, %56 in 0 : vector<1x8x8xf32>, vector<1x8x8xf32>, vector<1x8x8xf32>, vector<1x8x8xf32>, vector<1x8x8xf32>, vector<1x8x8xf32>, vector<1x8x8xf32>, vector<1x8x8xf32> -> vector<8x8x8xf32>
    %58 = vector.extract_strided_slice %37 {offsets = [0, 0], sizes = [8, 32], strides = [1, 1]} : vector<16x32xf32> to vector<8x32xf32>
    %59 = vector.extract_strided_slice %58 {offsets = [0, 0], sizes = [8, 8], strides = [1, 1]} : vector<8x32xf32> to vector<8x8xf32>
    %60 = vector.extract_strided_slice %58 {offsets = [0, 8], sizes = [8, 8], strides = [1, 1]} : vector<8x32xf32> to vector<8x8xf32>
    %61 = vector.extract_strided_slice %58 {offsets = [0, 16], sizes = [8, 8], strides = [1, 1]} : vector<8x32xf32> to vector<8x8xf32>
    %62 = vector.extract_strided_slice %58 {offsets = [0, 24], sizes = [8, 8], strides = [1, 1]} : vector<8x32xf32> to vector<8x8xf32>
    %63 = vector.extract_strided_slice %37 {offsets = [8, 0], sizes = [8, 32], strides = [1, 1]} : vector<16x32xf32> to vector<8x32xf32>
    %64 = vector.extract_strided_slice %63 {offsets = [0, 0], sizes = [8, 8], strides = [1, 1]} : vector<8x32xf32> to vector<8x8xf32>
    %65 = vector.extract_strided_slice %63 {offsets = [0, 8], sizes = [8, 8], strides = [1, 1]} : vector<8x32xf32> to vector<8x8xf32>
    %66 = vector.extract_strided_slice %63 {offsets = [0, 16], sizes = [8, 8], strides = [1, 1]} : vector<8x32xf32> to vector<8x8xf32>
    %67 = vector.extract_strided_slice %63 {offsets = [0, 24], sizes = [8, 8], strides = [1, 1]} : vector<8x32xf32> to vector<8x8xf32>
    %68 = vector.shape_cast %59 : vector<8x8xf32> to vector<1x8x8xf32>
    %69 = vector.shape_cast %60 : vector<8x8xf32> to vector<1x8x8xf32>
    %70 = vector.shape_cast %61 : vector<8x8xf32> to vector<1x8x8xf32>
    %71 = vector.shape_cast %62 : vector<8x8xf32> to vector<1x8x8xf32>
    %72 = vector.shape_cast %64 : vector<8x8xf32> to vector<1x8x8xf32>
    %73 = vector.shape_cast %65 : vector<8x8xf32> to vector<1x8x8xf32>
    %74 = vector.shape_cast %66 : vector<8x8xf32> to vector<1x8x8xf32>
    %75 = vector.shape_cast %67 : vector<8x8xf32> to vector<1x8x8xf32>
    %76 = tpu.concatenate %68, %69, %70, %71, %72, %73, %74, %75 in 0 : vector<1x8x8xf32>, vector<1x8x8xf32>, vector<1x8x8xf32>, vector<1x8x8xf32>, vector<1x8x8xf32>, vector<1x8x8xf32>, vector<1x8x8xf32>, vector<1x8x8xf32> -> vector<8x8x8xf32>
    %77 = vector.extract_strided_slice %38 {offsets = [0, 0], sizes = [8, 32], strides = [1, 1]} : vector<16x32xf32> to vector<8x32xf32>
    %78 = vector.extract_strided_slice %77 {offsets = [0, 0], sizes = [8, 8], strides = [1, 1]} : vector<8x32xf32> to vector<8x8xf32>
    %79 = vector.extract_strided_slice %77 {offsets = [0, 8], sizes = [8, 8], strides = [1, 1]} : vector<8x32xf32> to vector<8x8xf32>
    %80 = vector.extract_strided_slice %77 {offsets = [0, 16], sizes = [8, 8], strides = [1, 1]} : vector<8x32xf32> to vector<8x8xf32>
    %81 = vector.extract_strided_slice %77 {offsets = [0, 24], sizes = [8, 8], strides = [1, 1]} : vector<8x32xf32> to vector<8x8xf32>
    %82 = vector.extract_strided_slice %38 {offsets = [8, 0], sizes = [8, 32], strides = [1, 1]} : vector<16x32xf32> to vector<8x32xf32>
    %83 = vector.extract_strided_slice %82 {offsets = [0, 0], sizes = [8, 8], strides = [1, 1]} : vector<8x32xf32> to vector<8x8xf32>
    %84 = vector.extract_strided_slice %82 {offsets = [0, 8], sizes = [8, 8], strides = [1, 1]} : vector<8x32xf32> to vector<8x8xf32>
    %85 = vector.extract_strided_slice %82 {offsets = [0, 16], sizes = [8, 8], strides = [1, 1]} : vector<8x32xf32> to vector<8x8xf32>
    %86 = vector.extract_strided_slice %82 {offsets = [0, 24], sizes = [8, 8], strides = [1, 1]} : vector<8x32xf32> to vector<8x8xf32>
    %87 = vector.shape_cast %78 : vector<8x8xf32> to vector<1x8x8xf32>
    %88 = vector.shape_cast %79 : vector<8x8xf32> to vector<1x8x8xf32>
    %89 = vector.shape_cast %80 : vector<8x8xf32> to vector<1x8x8xf32>
    %90 = vector.shape_cast %81 : vector<8x8xf32> to vector<1x8x8xf32>
    %91 = vector.shape_cast %83 : vector<8x8xf32> to vector<1x8x8xf32>
    %92 = vector.shape_cast %84 : vector<8x8xf32> to vector<1x8x8xf32>
    %93 = vector.shape_cast %85 : vector<8x8xf32> to vector<1x8x8xf32>
    %94 = vector.shape_cast %86 : vector<8x8xf32> to vector<1x8x8xf32>
    %95 = tpu.concatenate %87, %88, %89, %90, %91, %92, %93, %94 in 0 : vector<1x8x8xf32>, vector<1x8x8xf32>, vector<1x8x8xf32>, vector<1x8x8xf32>, vector<1x8x8xf32>, vector<1x8x8xf32>, vector<1x8x8xf32>, vector<1x8x8xf32> -> vector<8x8x8xf32>
    %96 = tpu.iota {dimensions = array<i32: 1>} : vector<8x8xi32>
    %97 = tpu.iota {dimensions = array<i32: 0>} : vector<8x8xi32>
    %98 = arith.subi %96, %97 : vector<8x8xi32>
    %99 = arith.sitofp %98 : vector<8x8xi32> to vector<8x8xf32>
    %cst_10 = arith.constant 2.500000e-01 : f32
    %100 = vector.broadcast %cst_10 : f32 to vector<8x8xf32>
    %101 = arith.mulf %100, %99 : vector<8x8xf32>
    %cst_11 = arith.constant 6.250000e-02 : f32
    %102 = vector.broadcast %cst_11 : f32 to vector<8x8xf32>
    %103 = arith.mulf %102, %99 : vector<8x8xf32>
    %cst_12 = arith.constant 1.562500e-02 : f32
    %104 = vector.broadcast %cst_12 : f32 to vector<8x8xf32>
    %105 = arith.mulf %104, %99 : vector<8x8xf32>
    %cst_13 = arith.constant 3.906250e-03 : f32
    %106 = vector.broadcast %cst_13 : f32 to vector<8x8xf32>
    %107 = arith.mulf %106, %99 : vector<8x8xf32>
    %cst_14 = arith.constant 2.500000e-01 : f32
    %108 = vector.broadcast %cst_14 : f32 to vector<8x8xf32>
    %109 = arith.mulf %108, %99 : vector<8x8xf32>
    %cst_15 = arith.constant 6.250000e-02 : f32
    %110 = vector.broadcast %cst_15 : f32 to vector<8x8xf32>
    %111 = arith.mulf %110, %99 : vector<8x8xf32>
    %cst_16 = arith.constant 1.562500e-02 : f32
    %112 = vector.broadcast %cst_16 : f32 to vector<8x8xf32>
    %113 = arith.mulf %112, %99 : vector<8x8xf32>
    %cst_17 = arith.constant 3.906250e-03 : f32
    %114 = vector.broadcast %cst_17 : f32 to vector<8x8xf32>
    %115 = arith.mulf %114, %99 : vector<8x8xf32>
    %116 = vector.shape_cast %101 : vector<8x8xf32> to vector<1x8x8xf32>
    %117 = vector.shape_cast %103 : vector<8x8xf32> to vector<1x8x8xf32>
    %118 = vector.shape_cast %105 : vector<8x8xf32> to vector<1x8x8xf32>
    %119 = vector.shape_cast %107 : vector<8x8xf32> to vector<1x8x8xf32>
    %120 = vector.shape_cast %109 : vector<8x8xf32> to vector<1x8x8xf32>
    %121 = vector.shape_cast %111 : vector<8x8xf32> to vector<1x8x8xf32>
    %122 = vector.shape_cast %113 : vector<8x8xf32> to vector<1x8x8xf32>
    %123 = vector.shape_cast %115 : vector<8x8xf32> to vector<1x8x8xf32>
    %124 = tpu.concatenate %116, %117, %118, %119, %120, %121, %122, %123 in 0 : vector<1x8x8xf32>, vector<1x8x8xf32>, vector<1x8x8xf32>, vector<1x8x8xf32>, vector<1x8x8xf32>, vector<1x8x8xf32>, vector<1x8x8xf32>, vector<1x8x8xf32> -> vector<8x8x8xf32>
    "tpu.trace_start"() <{level = 10 : i32, message = "bld,bmd->blm"}> : () -> ()
    %cst_18 = arith.constant dense<0.000000e+00> : vector<8x8x8xf32>
    %125 = tpu.matmul %57, %76, %cst_18 {dimension_numbers = #tpu.dot_dimension_numbers<[2], [2], [1], [1], [0, 0, 0, 1, 1, 1], [0], [0]>} : vector<8x8x8xf32>, vector<8x8x8xf32>, vector<8x8x8xf32> -> vector<8x8x8xf32>
    "tpu.trace_stop"() : () -> ()
    %cst_19 = arith.constant 0.353553385 : f32
    %126 = vector.broadcast %cst_19 : f32 to vector<8x8x8xf32>
    %127 = arith.mulf %125, %126 : vector<8x8x8xf32>
    %128 = arith.addf %127, %124 : vector<8x8x8xf32>
    %cst_20 = arith.constant dense<0xFF800000> : vector<8x8xf32>
    %129 = vector.multi_reduction <maximumf>, %128, %cst_20 [2] : vector<8x8x8xf32> to vector<8x8xf32>
    %130 = vector.shape_cast %129 : vector<8x8xf32> to vector<8x8x1xf32>
    %131 = vector.broadcast %130 : vector<8x8x1xf32> to vector<8x8x8xf32>
    %132 = arith.subf %128, %131 : vector<8x8x8xf32>
    %133 = math.exp %132 : vector<8x8x8xf32>
    %cst_21 = arith.constant dense<0.000000e+00> : vector<8x8xf32>
    %134 = vector.multi_reduction <add>, %133, %cst_21 [2] : vector<8x8x8xf32> to vector<8x8xf32>
    %135 = vector.shape_cast %134 : vector<8x8xf32> to vector<8x8x1xf32>
    %136 = tpu.reciprocal %135 {approx = true} : vector<8x8x1xf32> -> vector<8x8x1xf32>
    %137 = vector.broadcast %136 : vector<8x8x1xf32> to vector<8x8x8xf32>
    %138 = arith.mulf %133, %137 : vector<8x8x8xf32>
    "tpu.trace_start"() <{level = 10 : i32, message = "blm,bmd->bld"}> : () -> ()
    %cst_22 = arith.constant dense<0.000000e+00> : vector<8x8x8xf32>
    %139 = tpu.matmul %138, %95, %cst_22 {dimension_numbers = #tpu.dot_dimension_numbers<[2], [1], [1], [2], [0, 0, 0, 1, 1, 2], [0], [0]>} : vector<8x8x8xf32>, vector<8x8x8xf32>, vector<8x8x8xf32> -> vector<8x8x8xf32>
    "tpu.trace_stop"() : () -> ()
    %140 = vector.extract_strided_slice %139 {offsets = [0, 0, 0], sizes = [1, 8, 8], strides = [1, 1, 1]} : vector<8x8x8xf32> to vector<1x8x8xf32>
    %141 = vector.shape_cast %140 : vector<1x8x8xf32> to vector<8x8xf32>
    %142 = vector.extract_strided_slice %139 {offsets = [1, 0, 0], sizes = [1, 8, 8], strides = [1, 1, 1]} : vector<8x8x8xf32> to vector<1x8x8xf32>
    %143 = vector.shape_cast %142 : vector<1x8x8xf32> to vector<8x8xf32>
    %144 = vector.extract_strided_slice %139 {offsets = [2, 0, 0], sizes = [1, 8, 8], strides = [1, 1, 1]} : vector<8x8x8xf32> to vector<1x8x8xf32>
    %145 = vector.shape_cast %144 : vector<1x8x8xf32> to vector<8x8xf32>
    %146 = vector.extract_strided_slice %139 {offsets = [3, 0, 0], sizes = [1, 8, 8], strides = [1, 1, 1]} : vector<8x8x8xf32> to vector<1x8x8xf32>
    %147 = vector.shape_cast %146 : vector<1x8x8xf32> to vector<8x8xf32>
    %148 = tpu.concatenate %141, %143, %145, %147 in 1 : vector<8x8xf32>, vector<8x8xf32>, vector<8x8xf32>, vector<8x8xf32> -> vector<8x32xf32>
    %149 = vector.extract_strided_slice %139 {offsets = [4, 0, 0], sizes = [1, 8, 8], strides = [1, 1, 1]} : vector<8x8x8xf32> to vector<1x8x8xf32>
    %150 = vector.shape_cast %149 : vector<1x8x8xf32> to vector<8x8xf32>
    %151 = vector.extract_strided_slice %139 {offsets = [5, 0, 0], sizes = [1, 8, 8], strides = [1, 1, 1]} : vector<8x8x8xf32> to vector<1x8x8xf32>
    %152 = vector.shape_cast %151 : vector<1x8x8xf32> to vector<8x8xf32>
    %153 = vector.extract_strided_slice %139 {offsets = [6, 0, 0], sizes = [1, 8, 8], strides = [1, 1, 1]} : vector<8x8x8xf32> to vector<1x8x8xf32>
    %154 = vector.shape_cast %153 : vector<1x8x8xf32> to vector<8x8xf32>
    %155 = vector.extract_strided_slice %139 {offsets = [7, 0, 0], sizes = [1, 8, 8], strides = [1, 1, 1]} : vector<8x8x8xf32> to vector<1x8x8xf32>
    %156 = vector.shape_cast %155 : vector<1x8x8xf32> to vector<8x8xf32>
    %157 = tpu.concatenate %150, %152, %154, %156 in 1 : vector<8x8xf32>, vector<8x8xf32>, vector<8x8xf32>, vector<8x8xf32> -> vector<8x32xf32>
    %158 = tpu.concatenate %148, %157 in 0 : vector<8x32xf32>, vector<8x32xf32> -> vector<16x32xf32>
    %c0_23 = arith.constant 0 : index
    %c0_24 = arith.constant 0 : index
    %159 = vector.load %arg2[%c0_23, %c0_24] : memref<32x32xf32, #tpu.memory_space<vmem>>, vector<32x32xf32>
    %cst_25 = arith.constant dense<0.000000e+00> : vector<16x32xf32>
    %160 = tpu.matmul %158, %159, %cst_25 {dimension_numbers = #tpu.dot_dimension_numbers<[1], [0], [0], [1], [0, 0, 1, 1], [], []>} : vector<16x32xf32>, vector<32x32xf32>, vector<16x32xf32> -> vector<16x32xf32>
    %161 = vector.broadcast %7 : vector<1x32xf32> to vector<16x32xf32>
    %162 = arith.addf %160, %161 : vector<16x32xf32>
    %163 = arith.addf %0, %162 : vector<16x32xf32>
    %cst_26 = arith.constant dense<0.000000e+00> : vector<16xf32>
    %164 = vector.multi_reduction <add>, %163, %cst_26 [1] : vector<16x32xf32> to vector<16xf32>
    %165 = vector.shape_cast %164 : vector<16xf32> to vector<16x1xf32>
    %cst_27 = arith.constant 3.200000e+01 : f32
    %166 = vector.broadcast %cst_27 : f32 to vector<16x1xf32>
    %167 = arith.divf %165, %166 : vector<16x1xf32>
    %168 = vector.broadcast %167 : vector<16x1xf32> to vector<16x32xf32>
    %169 = arith.subf %163, %168 : vector<16x32xf32>
    %170 = arith.mulf %169, %169 : vector<16x32xf32>
    %cst_28 = arith.constant dense<0.000000e+00> : vector<16xf32>
    %171 = vector.multi_reduction <add>, %170, %cst_28 [1] : vector<16x32xf32> to vector<16xf32>
    %172 = vector.shape_cast %171 : vector<16xf32> to vector<16x1xf32>
    %cst_29 = arith.constant 3.200000e+01 : f32
    %173 = vector.broadcast %cst_29 : f32 to vector<16x1xf32>
    %174 = arith.divf %172, %173 : vector<16x1xf32>
    %175 = vector.broadcast %167 : vector<16x1xf32> to vector<16x32xf32>
    %176 = arith.subf %163, %175 : vector<16x32xf32>
    %cst_30 = arith.constant 9.99999974E-6 : f32
    %177 = vector.broadcast %cst_30 : f32 to vector<16x1xf32>
    %178 = arith.addf %174, %177 : vector<16x1xf32>
    %179 = math.rsqrt %178 : vector<16x1xf32>
    %180 = vector.broadcast %179 : vector<16x1xf32> to vector<16x32xf32>
    %181 = arith.mulf %176, %180 : vector<16x32xf32>
    %182 = vector.broadcast %4 : vector<1x32xf32> to vector<16x32xf32>
    %183 = arith.mulf %181, %182 : vector<16x32xf32>
    %184 = vector.broadcast %5 : vector<1x32xf32> to vector<16x32xf32>
    %185 = arith.addf %183, %184 : vector<16x32xf32>
    %c0_31 = arith.constant 0 : index
    %c0_32 = arith.constant 0 : index
    %186 = vector.load %arg3[%c0_31, %c0_32] : memref<32x128xf32, #tpu.memory_space<vmem>>, vector<32x128xf32>
    %cst_33 = arith.constant dense<0.000000e+00> : vector<16x128xf32>
    %187 = tpu.matmul %185, %186, %cst_33 {dimension_numbers = #tpu.dot_dimension_numbers<[1], [0], [0], [1], [0, 0, 1, 1], [], []>} : vector<16x32xf32>, vector<32x128xf32>, vector<16x128xf32> -> vector<16x128xf32>
    %188 = vector.broadcast %9 : vector<1x128xf32> to vector<16x128xf32>
    %189 = arith.addf %187, %188 : vector<16x128xf32>
    %cst_34 = arith.constant 5.000000e-01 : f32
    %190 = vector.broadcast %cst_34 : f32 to vector<16x128xf32>
    %191 = arith.mulf %190, %189 : vector<16x128xf32>
    %cst_35 = arith.constant 4.471500e-02 : f32
    %192 = vector.broadcast %cst_35 : f32 to vector<16x128xf32>
    %193 = arith.mulf %192, %189 : vector<16x128xf32>
    %194 = arith.mulf %193, %189 : vector<16x128xf32>
    %195 = arith.mulf %194, %189 : vector<16x128xf32>
    %196 = arith.addf %189, %195 : vector<16x128xf32>
    %cst_36 = arith.constant 0.797884583 : f32
    %197 = vector.broadcast %cst_36 : f32 to vector<16x128xf32>
    %198 = arith.mulf %197, %196 : vector<16x128xf32>
    %199 = math.tanh %198 : vector<16x128xf32>
    %cst_37 = arith.constant 1.000000e+00 : f32
    %200 = vector.broadcast %cst_37 : f32 to vector<16x128xf32>
    %201 = arith.addf %200, %199 : vector<16x128xf32>
    %202 = arith.mulf %191, %201 : vector<16x128xf32>
    %c0_38 = arith.constant 0 : index
    %c0_39 = arith.constant 0 : index
    %203 = vector.load %arg4[%c0_38, %c0_39] : memref<128x32xf32, #tpu.memory_space<vmem>>, vector<128x32xf32>
    %cst_40 = arith.constant dense<0.000000e+00> : vector<16x32xf32>
    %204 = tpu.matmul %202, %203, %cst_40 {dimension_numbers = #tpu.dot_dimension_numbers<[1], [0], [0], [1], [0, 0, 1, 1], [], []>} : vector<16x128xf32>, vector<128x32xf32>, vector<16x32xf32> -> vector<16x32xf32>
    %205 = vector.broadcast %8 : vector<1x32xf32> to vector<16x32xf32>
    %206 = arith.addf %204, %205 : vector<16x32xf32>
    %207 = arith.addf %163, %206 : vector<16x32xf32>
    %c0_41 = arith.constant 0 : index
    %c0_42 = arith.constant 0 : index
    %208 = vector.load %arg6[%c0_41, %c0_42] : memref<16x32xf32, #tpu.memory_space<vmem>>, vector<16x32xf32>
    tpu.vector_store %arg6[%c0_41, %c0_42], %207 {strides = array<i32>} : memref<16x32xf32, #tpu.memory_space<vmem>>, vector<16x32xf32>,
    return
  }
}

</mosaic_0001>

<llo_original>
// kernel: transformer_block.1
$region0: #{transformer_block.1}
  #allocation0 [shape = 'u32[]', space=smem, size = 0x4, offset = 0x4, fixed_abs, tag = 'smem constant byte address 0x4 - core index']
  #allocation1 [shape = 'u32[144,128]{1,0:T(1,128)}', space=vmem, size = 0x12000, scoped, tag = 'internal scratch']
  %s0 = inlined_call_operand.vmem [shape: f32[16,32], index: 0, kind: input, shape index: {}]
  %s1 = inlined_call_operand.vmem [shape: f32[32,96], index: 1, kind: input, shape index: {}]
  %s2 = inlined_call_operand.vmem [shape: f32[32,32], index: 2, kind: input, shape index: {}]
  %s3 = inlined_call_operand.vmem [shape: f32[32,128], index: 3, kind: input, shape index: {}]
  %s4 = inlined_call_operand.vmem [shape: f32[128,32], index: 4, kind: input, shape index: {}]
  %s5 = inlined_call_operand.vmem [shape: f32[8,128], index: 5, kind: input, shape index: {}]
  %s6 = inlined_call_operand.hbm [shape: f32[16,32], index: 6, kind: output, shape index: {}]
  %s7 = sld [smem:[#allocation0]]
  $region34: #{transformer_block.1} parent=0
    _
  %s9 = ssub.s32 1, %s7
  %s10 = scalar_select 0, %s9, %s7
  $region1: #{transformer_block.1} parent=0
    #allocation2 [shape = 'u8[8192]{0}', space=vmem, size = 0x2000, scoped, tag = 'output window, operand 0, single buffered']
    #allocation3 [shape = 's32[1]{0}', space=sflag, size = 0x4, scoped, tag = 'scoped memory for transformer_block.1']
    %11 = vsyncpa [#allocation3], 0
    // Predicated region
    $region2: #{transformer_block.1} parent=1 // pred_check
      _
    $region3: #{transformer_block.1} parent=1 // pred_check_branch
      %13 = sbr.rel (0) target = $region5
    $region4: #{transformer_block.1} parent=1 // pred_region
      _
    $region5: #{transformer_block.1} parent=1 // pred_fallthru
      _
    // Predicated region
    $region6: #{transformer_block.1} parent=1 // pred_check
      _
    $region7: #{transformer_block.1} parent=1 // pred_check_branch
      %15 = sbr.rel (0) target = $region9
    $region8: #{transformer_block.1} parent=1 // pred_region
      _
    $region9: #{transformer_block.1} parent=1 // pred_fallthru
      _
    // Predicated region
    $region10: #{transformer_block.1} parent=1 // pred_check
      _
    $region11: #{transformer_block.1} parent=1 // pred_check_branch
      %17 = sbr.rel (0) target = $region13
    $region12: #{transformer_block.1} parent=1 // pred_region
      _
    $region13: #{transformer_block.1} parent=1 // pred_fallthru
      _
    // Predicated region
    $region14: #{transformer_block.1} parent=1 // pred_check
      _
    $region15: #{transformer_block.1} parent=1 // pred_check_branch
      %19 = sbr.rel (0) target = $region17
    $region16: #{transformer_block.1} parent=1 // pred_region
      _
    $region17: #{transformer_block.1} parent=1 // pred_fallthru
      _
    // Predicated region
    $region18: #{transformer_block.1} parent=1 // pred_check
      _
    $region19: #{transformer_block.1} parent=1 // pred_check_branch
      %21 = sbr.rel (0) target = $region21
    $region20: #{transformer_block.1} parent=1 // pred_region
      _
    $region21: #{transformer_block.1} parent=1 // pred_fallthru
      _
    // Predicated region
    $region22: #{transformer_block.1} parent=1 // pred_check
      _
    $region23: #{transformer_block.1} parent=1 // pred_check_branch
      %23 = sbr.rel (0) target = $region25
    $region24: #{transformer_block.1} parent=1 // pred_region
      _
    $region25: #{transformer_block.1} parent=1 // pred_fallthru
      _
    %v24 = vld [vmem:[%s0] sm:$0xff]
    %v25 = vld [vmem:[%s0 + $0x8] sm:$0xff]
    %v26 = vld [vmem:[%s5] sm:$0xff]
    %vm27 = vcmask 261120
    %v28 = vsel %vm27, %v24, 0.0
    %29 = vadd.xlane.f32.xlu0 %v28
    %v30 = vpop.xlane.xlu0 %29
    %v31 = vsel %vm27, %v25, 0.0
    %32 = vadd.xlane.f32.xlu0 %v31
    %v33 = vpop.xlane.xlu0 %32
    %v34 = vrcp.pop 32.0
    %v35 = vmul.f32 %v30, %v34
    %v36 = vmul.f32 %v33, %v34
    %v37 = vsub.f32 %v24, %v35
    %v38 = vsub.f32 %v25, %v36
    %v39 = vmul.f32 %v37, %v37
    %v40 = vmul.f32 %v38, %v38
    %v41 = vsel %vm27, %v39, 0.0
    %42 = vadd.xlane.f32.xlu0 %v41
    %v43 = vpop.xlane.xlu0 %42
    %v44 = vsel %vm27, %v40, 0.0
    %45 = vadd.xlane.f32.xlu0 %v44
    %v46 = vpop.xlane.xlu0 %45
    %v47 = vmul.f32 %v43, %v34
    %v48 = vmul.f32 %v46, %v34
    %v49 = vadd.f32 %v47, 1e-05
    %v50 = vadd.f32 %v48, 1e-05
    %v51 = vrsqrt.pop %v49
    %v52 = vrsqrt.pop %v50
    %v53 = vmul.f32 %v37, %v51
    %v54 = vmul.f32 %v38, %v52
    %v55 = vlaneseq
    %v56 = vshrl.u32 %v55, 7
    %v57 = vsub.s32 0, %v56
    %v58 = vrot.slane %v26, %v57
    %v59 = vmul.f32 %v53, %v58
    %v60 = vmul.f32 %v54, %v58
    %62 = vrot.lane.b32.xlu0 %v58, 96
    %v63 = vpop.permute.xlu0 %62
    %v65 = vadd.f32 %v59, %v63
    %v66 = vadd.f32 %v60, %v63
    %v67 = vld [vmem:[%s1] sm:$0xff]
    %v68 = vld [vmem:[%s1 + $0x8] sm:$0xff]
    %v69 = vld [vmem:[%s1 + $0x10] sm:$0xff]
    %v70 = vld [vmem:[%s1 + $0x18] sm:$0xff]
    %v71 = vlaneseq
    %v72 = vshrl.u32 %v71, 7
    %v73 = vsub.s32 1, %v72
    %v74 = vrot.slane %v26, %v73
    %v76 = vsel %vm27, %v65, 0
    %v79 = vsel %vm27, %v66, 0
    %81 = vmatprep.subr.mxu0 0.0
    %82 = vmatpush1.msra.mxu0 %v67
    %83 = vmatprep.subr.mxu0 0.0
    %84 = vmatpush1.msra.mxu0 %v68
    %85 = vmatprep.subr.mxu0 0.0
    %86 = vmatpush1.msra.mxu0 %v69
    %87 = vmatprep.subr.mxu0 0.0
    %88 = vmatpush1.msra.mxu0 %v70
    %89 = vmatprep.subr.mxu0 0.0
    %90 = vmatpush1.msra.mxu0 0.0
    %91 = vmatprep.subr.mxu0 0.0
    %92 = vmatpush1.msra.mxu0 0.0
    %93 = vmatprep.subr.mxu0 0.0
    %94 = vmatpush1.msra.mxu0 0.0
    %95 = vmatprep.subr.mxu0 0.0
    %96 = vmatpush1.msra.mxu0 0.0
    %97 = vmatprep.subr.mxu0 0.0
    %98 = vmatpush1.msra.mxu0 0.0
    %99 = vmatprep.subr.mxu0 0.0
    %100 = vmatpush1.msra.mxu0 0.0
    %101 = vmatprep.subr.mxu0 0.0
    %102 = vmatpush1.msra.mxu0 0.0
    %103 = vmatprep.subr.mxu0 0.0
    %104 = vmatpush1.msra.mxu0 0.0
    %105 = vmatprep.subr.mxu0 0.0
    %106 = vmatpush1.msra.mxu0 0.0
    %107 = vmatprep.subr.mxu0 0.0
    %108 = vmatpush1.msra.mxu0 0.0
    %109 = vmatprep.subr.mxu0 0.0
    %110 = vmatpush1.msra.mxu0 0.0
    %111 = vmatprep.subr.mxu0 0.0
    %112 = vmatpush1.msra.mxu0 0.0
    %113 = vmatprep.subr.mxu0 0.0
    %114 = vmatpush1.msra.mxu0 0.0
    %115 = vmatprep.subr.mxu0 0.0
    %116 = vmatpush1.msra.mxu0 0.0
    %117 = vmatprep.subr.mxu0 0.0
    %118 = vmatpush1.msra.mxu0 0.0
    %119 = vmatprep.subr.mxu0 0.0
    %120 = vmatpush1.msra.mxu0 0.0
    %121 = vmatprep.subr.mxu0 0.0
    %122 = vmatpush1.msra.mxu0 0.0
    %123 = vmatprep.subr.mxu0 0.0
    %124 = vmatpush1.msra.mxu0 0.0
    %125 = vmatprep.subr.mxu0 0.0
    %126 = vmatpush1.msra.mxu0 0.0
    %127 = vmatprep.subr.mxu0 0.0
    %128 = vmatpush1.msra.mxu0 0.0
    %129 = vmatprep.subr.mxu0 0.0
    %130 = vmatpush1.msra.mxu0 0.0
    %131 = vmatprep.subr.mxu0 0.0
    %132 = vmatpush1.msra.mxu0 0.0
    %133 = vmatprep.subr.mxu0 0.0
    %134 = vmatpush1.msra.mxu0 0.0
    %135 = vmatprep.subr.mxu0 0.0
    %136 = vmatpush1.msra.mxu0 0.0
    %137 = vmatprep.subr.mxu0 0.0
    %138 = vmatpush1.msra.mxu0 0.0
    %139 = vmatprep.subr.mxu0 0.0
    %140 = vmatpush1.msra.mxu0 0.0
    %141 = vmatprep.subr.mxu0 0.0
    %142 = vmatpush1.msra.mxu0 0.0
    %143 = vmatprep.subr.mxu0 0.0
    %144 = vmatpush1.msra.mxu0 0.0
    %145 = vmatprep.mubr.f32.mxu0 0.0
    %146 = vmatmul.mubr.f32.gmra.mrb[0].mxu0 %v76
    %v147 = vpop.f32.mrb[0].mxu0
    %v148 = vadd.f32 %v74, %v147
    %v149 = vpop.f32.mrb[0].mxu0
    %150 = vmatprep.mubr.f32.mxu0 0.0
    %151 = vmatmul.mubr.f32.gmra.mrb[0].mxu0 %v79
    %v152 = vpop.f32.mrb[0].mxu0
    %v153 = vadd.f32 %v74, %v152
    %v154 = vpop.f32.mrb[0].mxu0
    %155 = vdwg.mxu0
    %157 = vrot.lane.b32.xlu0 %v148, 120
    %v158 = vpop.permute.xlu0 %157
    %159 = vrot.lane.b32.xlu0 %v148, 112
    %v160 = vpop.permute.xlu0 %159
    %161 = vrot.lane.b32.xlu0 %v148, 104
    %v162 = vpop.permute.xlu0 %161
    %164 = vrot.lane.b32.xlu0 %v153, 120
    %v165 = vpop.permute.xlu0 %164
    %166 = vrot.lane.b32.xlu0 %v153, 112
    %v167 = vpop.permute.xlu0 %166
    %168 = vrot.lane.b32.xlu0 %v153, 104
    %v169 = vpop.permute.xlu0 %168
    %v170 = vlaneseq
    %v171 = vand.u32 %v170, 127
    %v172 = vlaneseq
    %v173 = vshrl.u32 %v172, 7
    %v174 = vsub.s32 %v171, %v173
    %v175 = vcvt.s32.f32 %v174
    %v176 = vmul.f32 %v175, 0.25
    %v177 = vmul.f32 %v175, 0.0625
    %v178 = vmul.f32 %v175, 0.015625
    %v179 = vmul.f32 %v175, 0.00390625
    %180 = vrot.lane.b32.xlu0 %v148, 96
    %v181 = vpop.permute.xlu0 %180
    %vm182 = vcmask 64512
    %v183 = vsel %vm182, %v148, 0
    %v185 = vsel %vm182, %v181, 0
    %187 = vmatprep.subr.mxu0 0.0
    %188 = vmatpush1.xpose.msra.mxu0 %v185
    %189 = vmatprep.subr.mxu0 0.0
    %190 = vmatpush1.xpose.msra.mxu0 0.0
    %191 = vmatprep.subr.mxu0 0.0
    %192 = vmatpush1.xpose.msra.mxu0 0.0
    %193 = vmatprep.subr.mxu0 0.0
    %194 = vmatpush1.xpose.msra.mxu0 0.0
    %195 = vmatprep.subr.mxu0 0.0
    %196 = vmatpush1.xpose.msra.mxu0 0.0
    %197 = vmatprep.subr.mxu0 0.0
    %198 = vmatpush1.xpose.msra.mxu0 0.0
    %199 = vmatprep.subr.mxu0 0.0
    %200 = vmatpush1.xpose.msra.mxu0 0.0
    %201 = vmatprep.subr.mxu0 0.0
    %202 = vmatpush1.xpose.msra.mxu0 0.0
    %203 = vmatprep.subr.mxu0 0.0
    %204 = vmatpush1.xpose.msra.mxu0 0.0
    %205 = vmatprep.subr.mxu0 0.0
    %206 = vmatpush1.xpose.msra.mxu0 0.0
    %207 = vmatprep.subr.mxu0 0.0
    %208 = vmatpush1.xpose.msra.mxu0 0.0
    %209 = vmatprep.subr.mxu0 0.0
    %210 = vmatpush1.xpose.msra.mxu0 0.0
    %211 = vmatprep.subr.mxu0 0.0
    %212 = vmatpush1.xpose.msra.mxu0 0.0
    %213 = vmatprep.subr.mxu0 0.0
    %214 = vmatpush1.xpose.msra.mxu0 0.0
    %215 = vmatprep.subr.mxu0 0.0
    %216 = vmatpush1.xpose.msra.mxu0 0.0
    %217 = vmatprep.subr.mxu0 0.0
    %218 = vmatpush1.xpose.msra.mxu0 0.0
    %219 = vmatprep.subr.mxu0 0.0
    %220 = vmatpush1.xpose.msra.mxu0 0.0
    %221 = vmatprep.subr.mxu0 0.0
    %222 = vmatpush1.xpose.msra.mxu0 0.0
    %223 = vmatprep.subr.mxu0 0.0
    %224 = vmatpush1.xpose.msra.mxu0 0.0
    %225 = vmatprep.subr.mxu0 0.0
    %226 = vmatpush1.xpose.msra.mxu0 0.0
    %227 = vmatprep.subr.mxu0 0.0
    %228 = vmatpush1.xpose.msra.mxu0 0.0
    %229 = vmatprep.subr.mxu0 0.0
    %230 = vmatpush1.xpose.msra.mxu0 0.0
    %231 = vmatprep.subr.mxu0 0.0
    %232 = vmatpush1.xpose.msra.mxu0 0.0
    %233 = vmatprep.subr.mxu0 0.0
    %234 = vmatpush1.xpose.msra.mxu0 0.0
    %235 = vmatprep.subr.mxu0 0.0
    %236 = vmatpush1.xpose.msra.mxu0 0.0
    %237 = vmatprep.subr.mxu0 0.0
    %238 = vmatpush1.xpose.msra.mxu0 0.0
    %239 = vmatprep.subr.mxu0 0.0
    %240 = vmatpush1.xpose.msra.mxu0 0.0
    %241 = vmatprep.subr.mxu0 0.0
    %242 = vmatpush1.xpose.msra.mxu0 0.0
    %243 = vmatprep.subr.mxu0 0.0
    %244 = vmatpush1.xpose.msra.mxu0 0.0
    %245 = vmatprep.subr.mxu0 0.0
    %246 = vmatpush1.xpose.msra.mxu0 0.0
    %247 = vmatprep.subr.mxu0 0.0
    %248 = vmatpush1.xpose.msra.mxu0 0.0
    %249 = vmatprep.subr.mxu0 0.0
    %250 = vmatpush1.xpose.msra.mxu0 0.0
    %251 = vmatprep.mubr.f32.mxu0 0.0
    %252 = vmatmul.mubr.f32.gmra.mrb[0].mxu0 %v183
    %v253 = vpop.f32.mrb[0].mxu0
    %v254 = vadd.f32 0.0, %v253
    %v255 = vpop.f32.mrb[0].mxu0
    %256 = vdwg.mxu0
    %257 = vrot.lane.b32.xlu0 %v158, 96
    %v258 = vpop.permute.xlu0 %257
    %v259 = vsel %vm182, %v158, 0
    %v261 = vsel %vm182, %v258, 0
    %263 = vmatprep.subr.mxu0 0.0
    %264 = vmatpush1.xpose.msra.mxu0 %v261
    %265 = vmatprep.subr.mxu0 0.0
    %266 = vmatpush1.xpose.msra.mxu0 0.0
    %267 = vmatprep.subr.mxu0 0.0
    %268 = vmatpush1.xpose.msra.mxu0 0.0
    %269 = vmatprep.subr.mxu0 0.0
    %270 = vmatpush1.xpose.msra.mxu0 0.0
    %271 = vmatprep.subr.mxu0 0.0
    %272 = vmatpush1.xpose.msra.mxu0 0.0
    %273 = vmatprep.subr.mxu0 0.0
    %274 = vmatpush1.xpose.msra.mxu0 0.0
    %275 = vmatprep.subr.mxu0 0.0
    %276 = vmatpush1.xpose.msra.mxu0 0.0
    %277 = vmatprep.subr.mxu0 0.0
    %278 = vmatpush1.xpose.msra.mxu0 0.0
    %279 = vmatprep.subr.mxu0 0.0
    %280 = vmatpush1.xpose.msra.mxu0 0.0
    %281 = vmatprep.subr.mxu0 0.0
    %282 = vmatpush1.xpose.msra.mxu0 0.0
    %283 = vmatprep.subr.mxu0 0.0
    %284 = vmatpush1.xpose.msra.mxu0 0.0
    %285 = vmatprep.subr.mxu0 0.0
    %286 = vmatpush1.xpose.msra.mxu0 0.0
    %287 = vmatprep.subr.mxu0 0.0
    %288 = vmatpush1.xpose.msra.mxu0 0.0
    %289 = vmatprep.subr.mxu0 0.0
    %290 = vmatpush1.xpose.msra.mxu0 0.0
    %291 = vmatprep.subr.mxu0 0.0
    %292 = vmatpush1.xpose.msra.mxu0 0.0
    %293 = vmatprep.subr.mxu0 0.0
    %294 = vmatpush1.xpose.msra.mxu0 0.0
    %295 = vmatprep.subr.mxu0 0.0
    %296 = vmatpush1.xpose.msra.mxu0 0.0
    %297 = vmatprep.subr.mxu0 0.0
    %298 = vmatpush1.xpose.msra.mxu0 0.0
    %299 = vmatprep.subr.mxu0 0.0
    %300 = vmatpush1.xpose.msra.mxu0 0.0
    %301 = vmatprep.subr.mxu0 0.0
    %302 = vmatpush1.xpose.msra.mxu0 0.0
    %303 = vmatprep.subr.mxu0 0.0
    %304 = vmatpush1.xpose.msra.mxu0 0.0
    %305 = vmatprep.subr.mxu0 0.0
    %306 = vmatpush1.xpose.msra.mxu0 0.0
    %307 = vmatprep.subr.mxu0 0.0
    %308 = vmatpush1.xpose.msra.mxu0 0.0
    %309 = vmatprep.subr.mxu0 0.0
    %310 = vmatpush1.xpose.msra.mxu0 0.0
    %311 = vmatprep.subr.mxu0 0.0
    %312 = vmatpush1.xpose.msra.mxu0 0.0
    %313 = vmatprep.subr.mxu0 0.0
    %314 = vmatpush1.xpose.msra.mxu0 0.0
    %315 = vmatprep.subr.mxu0 0.0
    %316 = vmatpush1.xpose.msra.mxu0 0.0
    %317 = vmatprep.subr.mxu0 0.0
    %318 = vmatpush1.xpose.msra.mxu0 0.0
    %319 = vmatprep.subr.mxu0 0.0
    %320 = vmatpush1.xpose.msra.mxu0 0.0
    %321 = vmatprep.subr.mxu0 0.0
    %322 = vmatpush1.xpose.msra.mxu0 0.0
    %323 = vmatprep.subr.mxu0 0.0
    %324 = vmatpush1.xpose.msra.mxu0 0.0
    %325 = vmatprep.subr.mxu0 0.0
    %326 = vmatpush1.xpose.msra.mxu0 0.0
    %327 = vmatprep.mubr.f32.mxu0 0.0
    %328 = vmatmul.mubr.f32.gmra.mrb[0].mxu0 %v259
    %v329 = vpop.f32.mrb[0].mxu0
    %v330 = vadd.f32 0.0, %v329
    %v331 = vpop.f32.mrb[0].mxu0
    %332 = vdwg.mxu0
    %333 = vrot.lane.b32.xlu0 %v160, 96
    %v334 = vpop.permute.xlu0 %333
    %v335 = vsel %vm182, %v160, 0
    %v337 = vsel %vm182, %v334, 0
    %339 = vmatprep.subr.mxu0 0.0
    %340 = vmatpush1.xpose.msra.mxu0 %v337
    %341 = vmatprep.subr.mxu0 0.0
    %342 = vmatpush1.xpose.msra.mxu0 0.0
    %343 = vmatprep.subr.mxu0 0.0
    %344 = vmatpush1.xpose.msra.mxu0 0.0
    %345 = vmatprep.subr.mxu0 0.0
    %346 = vmatpush1.xpose.msra.mxu0 0.0
    %347 = vmatprep.subr.mxu0 0.0
    %348 = vmatpush1.xpose.msra.mxu0 0.0
    %349 = vmatprep.subr.mxu0 0.0
    %350 = vmatpush1.xpose.msra.mxu0 0.0
    %351 = vmatprep.subr.mxu0 0.0
    %352 = vmatpush1.xpose.msra.mxu0 0.0
    %353 = vmatprep.subr.mxu0 0.0
    %354 = vmatpush1.xpose.msra.mxu0 0.0
    %355 = vmatprep.subr.mxu0 0.0
    %356 = vmatpush1.xpose.msra.mxu0 0.0
    %357 = vmatprep.subr.mxu0 0.0
    %358 = vmatpush1.xpose.msra.mxu0 0.0
    %359 = vmatprep.subr.mxu0 0.0
    %360 = vmatpush1.xpose.msra.mxu0 0.0
    %361 = vmatprep.subr.mxu0 0.0
    %362 = vmatpush1.xpose.msra.mxu0 0.0
    %363 = vmatprep.subr.mxu0 0.0
    %364 = vmatpush1.xpose.msra.mxu0 0.0
    %365 = vmatprep.subr.mxu0 0.0
    %366 = vmatpush1.xpose.msra.mxu0 0.0
    %367 = vmatprep.subr.mxu0 0.0
    %368 = vmatpush1.xpose.msra.mxu0 0.0
    %369 = vmatprep.subr.mxu0 0.0
    %370 = vmatpush1.xpose.msra.mxu0 0.0
    %371 = vmatprep.subr.mxu0 0.0
    %372 = vmatpush1.xpose.msra.mxu0 0.0
    %373 = vmatprep.subr.mxu0 0.0
    %374 = vmatpush1.xpose.msra.mxu0 0.0
    %375 = vmatprep.subr.mxu0 0.0
    %376 = vmatpush1.xpose.msra.mxu0 0.0
    %377 = vmatprep.subr.mxu0 0.0
    %378 = vmatpush1.xpose.msra.mxu0 0.0
    %379 = vmatprep.subr.mxu0 0.0
    %380 = vmatpush1.xpose.msra.mxu0 0.0
    %381 = vmatprep.subr.mxu0 0.0
    %382 = vmatpush1.xpose.msra.mxu0 0.0
    %383 = vmatprep.subr.mxu0 0.0
    %384 = vmatpush1.xpose.msra.mxu0 0.0
    %385 = vmatprep.subr.mxu0 0.0
    %386 = vmatpush1.xpose.msra.mxu0 0.0
    %387 = vmatprep.subr.mxu0 0.0
    %388 = vmatpush1.xpose.msra.mxu0 0.0
    %389 = vmatprep.subr.mxu0 0.0
    %390 = vmatpush1.xpose.msra.mxu0 0.0
    %391 = vmatprep.subr.mxu0 0.0
    %392 = vmatpush1.xpose.msra.mxu0 0.0
    %393 = vmatprep.subr.mxu0 0.0
    %394 = vmatpush1.xpose.msra.mxu0 0.0
    %395 = vmatprep.subr.mxu0 0.0
    %396 = vmatpush1.xpose.msra.mxu0 0.0
    %397 = vmatprep.subr.mxu0 0.0
    %398 = vmatpush1.xpose.msra.mxu0 0.0
    %399 = vmatprep.subr.mxu0 0.0
    %400 = vmatpush1.xpose.msra.mxu0 0.0
    %401 = vmatprep.subr.mxu0 0.0
    %402 = vmatpush1.xpose.msra.mxu0 0.0
    %403 = vmatprep.mubr.f32.mxu0 0.0
    %404 = vmatmul.mubr.f32.gmra.mrb[0].mxu0 %v335
    %v405 = vpop.f32.mrb[0].mxu0
    %v406 = vadd.f32 0.0, %v405
    %v407 = vpop.f32.mrb[0].mxu0
    %408 = vdwg.mxu0
    %409 = vrot.lane.b32.xlu0 %v162, 96
    %v410 = vpop.permute.xlu0 %409
    %v411 = vsel %vm182, %v162, 0
    %v413 = vsel %vm182, %v410, 0
    %415 = vmatprep.subr.mxu0 0.0
    %416 = vmatpush1.xpose.msra.mxu0 %v413
    %417 = vmatprep.subr.mxu0 0.0
    %418 = vmatpush1.xpose.msra.mxu0 0.0
    %419 = vmatprep.subr.mxu0 0.0
    %420 = vmatpush1.xpose.msra.mxu0 0.0
    %421 = vmatprep.subr.mxu0 0.0
    %422 = vmatpush1.xpose.msra.mxu0 0.0
    %423 = vmatprep.subr.mxu0 0.0
    %424 = vmatpush1.xpose.msra.mxu0 0.0
    %425 = vmatprep.subr.mxu0 0.0
    %426 = vmatpush1.xpose.msra.mxu0 0.0
    %427 = vmatprep.subr.mxu0 0.0
    %428 = vmatpush1.xpose.msra.mxu0 0.0
    %429 = vmatprep.subr.mxu0 0.0
    %430 = vmatpush1.xpose.msra.mxu0 0.0
    %431 = vmatprep.subr.mxu0 0.0
    %432 = vmatpush1.xpose.msra.mxu0 0.0
    %433 = vmatprep.subr.mxu0 0.0
    %434 = vmatpush1.xpose.msra.mxu0 0.0
    %435 = vmatprep.subr.mxu0 0.0
    %436 = vmatpush1.xpose.msra.mxu0 0.0
    %437 = vmatprep.subr.mxu0 0.0
    %438 = vmatpush1.xpose.msra.mxu0 0.0
    %439 = vmatprep.subr.mxu0 0.0
    %440 = vmatpush1.xpose.msra.mxu0 0.0
    %441 = vmatprep.subr.mxu0 0.0
    %442 = vmatpush1.xpose.msra.mxu0 0.0
    %443 = vmatprep.subr.mxu0 0.0
    %444 = vmatpush1.xpose.msra.mxu0 0.0
    %445 = vmatprep.subr.mxu0 0.0
    %446 = vmatpush1.xpose.msra.mxu0 0.0
    %447 = vmatprep.subr.mxu0 0.0
    %448 = vmatpush1.xpose.msra.mxu0 0.0
    %449 = vmatprep.subr.mxu0 0.0
    %450 = vmatpush1.xpose.msra.mxu0 0.0
    %451 = vmatprep.subr.mxu0 0.0
    %452 = vmatpush1.xpose.msra.mxu0 0.0
    %453 = vmatprep.subr.mxu0 0.0
    %454 = vmatpush1.xpose.msra.mxu0 0.0
    %455 = vmatprep.subr.mxu0 0.0
    %456 = vmatpush1.xpose.msra.mxu0 0.0
    %457 = vmatprep.subr.mxu0 0.0
    %458 = vmatpush1.xpose.msra.mxu0 0.0
    %459 = vmatprep.subr.mxu0 0.0
    %460 = vmatpush1.xpose.msra.mxu0 0.0
    %461 = vmatprep.subr.mxu0 0.0
    %462 = vmatpush1.xpose.msra.mxu0 0.0
    %463 = vmatprep.subr.mxu0 0.0
    %464 = vmatpush1.xpose.msra.mxu0 0.0
    %465 = vmatprep.subr.mxu0 0.0
    %466 = vmatpush1.xpose.msra.mxu0 0.0
    %467 = vmatprep.subr.mxu0 0.0
    %468 = vmatpush1.xpose.msra.mxu0 0.0
    %469 = vmatprep.subr.mxu0 0.0
    %470 = vmatpush1.xpose.msra.mxu0 0.0
    %471 = vmatprep.subr.mxu0 0.0
    %472 = vmatpush1.xpose.msra.mxu0 0.0
    %473 = vmatprep.subr.mxu0 0.0
    %474 = vmatpush1.xpose.msra.mxu0 0.0
    %475 = vmatprep.subr.mxu0 0.0
    %476 = vmatpush1.xpose.msra.mxu0 0.0
    %477 = vmatprep.subr.mxu0 0.0
    %478 = vmatpush1.xpose.msra.mxu0 0.0
    %479 = vmatprep.mubr.f32.mxu0 0.0
    %480 = vmatmul.mubr.f32.gmra.mrb[0].mxu0 %v411
    %v481 = vpop.f32.mrb[0].mxu0
    %v482 = vadd.f32 0.0, %v481
    %v483 = vpop.f32.mrb[0].mxu0
    %484 = vdwg.mxu0
    %485 = vrot.lane.b32.xlu0 %v153, 96
    %v486 = vpop.permute.xlu0 %485
    %v487 = vsel %vm182, %v153, 0
    %v489 = vsel %vm182, %v486, 0
    %491 = vmatprep.subr.mxu0 0.0
    %492 = vmatpush1.xpose.msra.mxu0 %v489
    %493 = vmatprep.subr.mxu0 0.0
    %494 = vmatpush1.xpose.msra.mxu0 0.0
    %495 = vmatprep.subr.mxu0 0.0
    %496 = vmatpush1.xpose.msra.mxu0 0.0
    %497 = vmatprep.subr.mxu0 0.0
    %498 = vmatpush1.xpose.msra.mxu0 0.0
    %499 = vmatprep.subr.mxu0 0.0
    %500 = vmatpush1.xpose.msra.mxu0 0.0
    %501 = vmatprep.subr.mxu0 0.0
    %502 = vmatpush1.xpose.msra.mxu0 0.0
    %503 = vmatprep.subr.mxu0 0.0
    %504 = vmatpush1.xpose.msra.mxu0 0.0
    %505 = vmatprep.subr.mxu0 0.0
    %506 = vmatpush1.xpose.msra.mxu0 0.0
    %507 = vmatprep.subr.mxu0 0.0
    %508 = vmatpush1.xpose.msra.mxu0 0.0
    %509 = vmatprep.subr.mxu0 0.0
    %510 = vmatpush1.xpose.msra.mxu0 0.0
    %511 = vmatprep.subr.mxu0 0.0
    %512 = vmatpush1.xpose.msra.mxu0 0.0
    %513 = vmatprep.subr.mxu0 0.0
    %514 = vmatpush1.xpose.msra.mxu0 0.0
    %515 = vmatprep.subr.mxu0 0.0
    %516 = vmatpush1.xpose.msra.mxu0 0.0
    %517 = vmatprep.subr.mxu0 0.0
    %518 = vmatpush1.xpose.msra.mxu0 0.0
    %519 = vmatprep.subr.mxu0 0.0
    %520 = vmatpush1.xpose.msra.mxu0 0.0
    %521 = vmatprep.subr.mxu0 0.0
    %522 = vmatpush1.xpose.msra.mxu0 0.0
    %523 = vmatprep.subr.mxu0 0.0
    %524 = vmatpush1.xpose.msra.mxu0 0.0
    %525 = vmatprep.subr.mxu0 0.0
    %526 = vmatpush1.xpose.msra.mxu0 0.0
    %527 = vmatprep.subr.mxu0 0.0
    %528 = vmatpush1.xpose.msra.mxu0 0.0
    %529 = vmatprep.subr.mxu0 0.0
    %530 = vmatpush1.xpose.msra.mxu0 0.0
    %531 = vmatprep.subr.mxu0 0.0
    %532 = vmatpush1.xpose.msra.mxu0 0.0
    %533 = vmatprep.subr.mxu0 0.0
    %534 = vmatpush1.xpose.msra.mxu0 0.0
    %535 = vmatprep.subr.mxu0 0.0
    %536 = vmatpush1.xpose.msra.mxu0 0.0
    %537 = vmatprep.subr.mxu0 0.0
    %538 = vmatpush1.xpose.msra.mxu0 0.0
    %539 = vmatprep.subr.mxu0 0.0
    %540 = vmatpush1.xpose.msra.mxu0 0.0
    %541 = vmatprep.subr.mxu0 0.0
    %542 = vmatpush1.xpose.msra.mxu0 0.0
    %543 = vmatprep.subr.mxu0 0.0
    %544 = vmatpush1.xpose.msra.mxu0 0.0
    %545 = vmatprep.subr.mxu0 0.0
    %546 = vmatpush1.xpose.msra.mxu0 0.0
    %547 = vmatprep.subr.mxu0 0.0
    %548 = vmatpush1.xpose.msra.mxu0 0.0
    %549 = vmatprep.subr.mxu0 0.0
    %550 = vmatpush1.xpose.msra.mxu0 0.0
    %551 = vmatprep.subr.mxu0 0.0
    %552 = vmatpush1.xpose.msra.mxu0 0.0
    %553 = vmatprep.subr.mxu0 0.0
    %554 = vmatpush1.xpose.msra.mxu0 0.0
    %555 = vmatprep.mubr.f32.mxu0 0.0
    %556 = vmatmul.mubr.f32.gmra.mrb[0].mxu0 %v487
    %v557 = vpop.f32.mrb[0].mxu0
    %v558 = vadd.f32 0.0, %v557
    %v559 = vpop.f32.mrb[0].mxu0
    %560 = vdwg.mxu0
    %561 = vrot.lane.b32.xlu0 %v165, 96
    %v562 = vpop.permute.xlu0 %561
    %v563 = vsel %vm182, %v165, 0
    %v565 = vsel %vm182, %v562, 0
    %567 = vmatprep.subr.mxu0 0.0
    %568 = vmatpush1.xpose.msra.mxu0 %v565
    %569 = vmatprep.subr.mxu0 0.0
    %570 = vmatpush1.xpose.msra.mxu0 0.0
    %571 = vmatprep.subr.mxu0 0.0
    %572 = vmatpush1.xpose.msra.mxu0 0.0
    %573 = vmatprep.subr.mxu0 0.0
    %574 = vmatpush1.xpose.msra.mxu0 0.0
    %575 = vmatprep.subr.mxu0 0.0
    %576 = vmatpush1.xpose.msra.mxu0 0.0
    %577 = vmatprep.subr.mxu0 0.0
    %578 = vmatpush1.xpose.msra.mxu0 0.0
    %579 = vmatprep.subr.mxu0 0.0
    %580 = vmatpush1.xpose.msra.mxu0 0.0
    %581 = vmatprep.subr.mxu0 0.0
    %582 = vmatpush1.xpose.msra.mxu0 0.0
    %583 = vmatprep.subr.mxu0 0.0
    %584 = vmatpush1.xpose.msra.mxu0 0.0
    %585 = vmatprep.subr.mxu0 0.0
    %586 = vmatpush1.xpose.msra.mxu0 0.0
    %587 = vmatprep.subr.mxu0 0.0
    %588 = vmatpush1.xpose.msra.mxu0 0.0
    %589 = vmatprep.subr.mxu0 0.0
    %590 = vmatpush1.xpose.msra.mxu0 0.0
    %591 = vmatprep.subr.mxu0 0.0
    %592 = vmatpush1.xpose.msra.mxu0 0.0
    %593 = vmatprep.subr.mxu0 0.0
    %594 = vmatpush1.xpose.msra.mxu0 0.0
    %595 = vmatprep.subr.mxu0 0.0
    %596 = vmatpush1.xpose.msra.mxu0 0.0
    %597 = vmatprep.subr.mxu0 0.0
    %598 = vmatpush1.xpose.msra.mxu0 0.0
    %599 = vmatprep.subr.mxu0 0.0
    %600 = vmatpush1.xpose.msra.mxu0 0.0
    %601 = vmatprep.subr.mxu0 0.0
    %602 = vmatpush1.xpose.msra.mxu0 0.0
    %603 = vmatprep.subr.mxu0 0.0
    %604 = vmatpush1.xpose.msra.mxu0 0.0
    %605 = vmatprep.subr.mxu0 0.0
    %606 = vmatpush1.xpose.msra.mxu0 0.0
    %607 = vmatprep.subr.mxu0 0.0
    %608 = vmatpush1.xpose.msra.mxu0 0.0
    %609 = vmatprep.subr.mxu0 0.0
    %610 = vmatpush1.xpose.msra.mxu0 0.0
    %611 = vmatprep.subr.mxu0 0.0
    %612 = vmatpush1.xpose.msra.mxu0 0.0
    %613 = vmatprep.subr.mxu0 0.0
    %614 = vmatpush1.xpose.msra.mxu0 0.0
    %615 = vmatprep.subr.mxu0 0.0
    %616 = vmatpush1.xpose.msra.mxu0 0.0
    %617 = vmatprep.subr.mxu0 0.0
    %618 = vmatpush1.xpose.msra.mxu0 0.0
    %619 = vmatprep.subr.mxu0 0.0
    %620 = vmatpush1.xpose.msra.mxu0 0.0
    %621 = vmatprep.subr.mxu0 0.0
    %622 = vmatpush1.xpose.msra.mxu0 0.0
    %623 = vmatprep.subr.mxu0 0.0
    %624 = vmatpush1.xpose.msra.mxu0 0.0
    %625 = vmatprep.subr.mxu0 0.0
    %626 = vmatpush1.xpose.msra.mxu0 0.0
    %627 = vmatprep.subr.mxu0 0.0
    %628 = vmatpush1.xpose.msra.mxu0 0.0
    %629 = vmatprep.subr.mxu0 0.0
    %630 = vmatpush1.xpose.msra.mxu0 0.0
    %631 = vmatprep.mubr.f32.mxu0 0.0
    %632 = vmatmul.mubr.f32.gmra.mrb[0].mxu0 %v563
    %v633 = vpop.f32.mrb[0].mxu0
    %v634 = vadd.f32 0.0, %v633
    %v635 = vpop.f32.mrb[0].mxu0
    %636 = vdwg.mxu0
    %637 = vrot.lane.b32.xlu0 %v167, 96
    %v638 = vpop.permute.xlu0 %637
    %v639 = vsel %vm182, %v167, 0
    %v641 = vsel %vm182, %v638, 0
    %643 = vmatprep.subr.mxu0 0.0
    %644 = vmatpush1.xpose.msra.mxu0 %v641
    %645 = vmatprep.subr.mxu0 0.0
    %646 = vmatpush1.xpose.msra.mxu0 0.0
    %647 = vmatprep.subr.mxu0 0.0
    %648 = vmatpush1.xpose.msra.mxu0 0.0
    %649 = vmatprep.subr.mxu0 0.0
    %650 = vmatpush1.xpose.msra.mxu0 0.0
    %651 = vmatprep.subr.mxu0 0.0
    %652 = vmatpush1.xpose.msra.mxu0 0.0
    %653 = vmatprep.subr.mxu0 0.0
    %654 = vmatpush1.xpose.msra.mxu0 0.0
    %655 = vmatprep.subr.mxu0 0.0
    %656 = vmatpush1.xpose.msra.mxu0 0.0
    %657 = vmatprep.subr.mxu0 0.0
    %658 = vmatpush1.xpose.msra.mxu0 0.0
    %659 = vmatprep.subr.mxu0 0.0
    %660 = vmatpush1.xpose.msra.mxu0 0.0
    %661 = vmatprep.subr.mxu0 0.0
    %662 = vmatpush1.xpose.msra.mxu0 0.0
    %663 = vmatprep.subr.mxu0 0.0
    %664 = vmatpush1.xpose.msra.mxu0 0.0
    %665 = vmatprep.subr.mxu0 0.0
    %666 = vmatpush1.xpose.msra.mxu0 0.0
    %667 = vmatprep.subr.mxu0 0.0
    %668 = vmatpush1.xpose.msra.mxu0 0.0
    %669 = vmatprep.subr.mxu0 0.0
    %670 = vmatpush1.xpose.msra.mxu0 0.0
    %671 = vmatprep.subr.mxu0 0.0
    %672 = vmatpush1.xpose.msra.mxu0 0.0
    %673 = vmatprep.subr.mxu0 0.0
    %674 = vmatpush1.xpose.msra.mxu0 0.0
    %675 = vmatprep.subr.mxu0 0.0
    %676 = vmatpush1.xpose.msra.mxu0 0.0
    %677 = vmatprep.subr.mxu0 0.0
    %678 = vmatpush1.xpose.msra.mxu0 0.0
    %679 = vmatprep.subr.mxu0 0.0
    %680 = vmatpush1.xpose.msra.mxu0 0.0
    %681 = vmatprep.subr.mxu0 0.0
    %682 = vmatpush1.xpose.msra.mxu0 0.0
    %683 = vmatprep.subr.mxu0 0.0
    %684 = vmatpush1.xpose.msra.mxu0 0.0
    %685 = vmatprep.subr.mxu0 0.0
    %686 = vmatpush1.xpose.msra.mxu0 0.0
    %687 = vmatprep.subr.mxu0 0.0
    %688 = vmatpush1.xpose.msra.mxu0 0.0
    %689 = vmatprep.subr.mxu0 0.0
    %690 = vmatpush1.xpose.msra.mxu0 0.0
    %691 = vmatprep.subr.mxu0 0.0
    %692 = vmatpush1.xpose.msra.mxu0 0.0
    %693 = vmatprep.subr.mxu0 0.0
    %694 = vmatpush1.xpose.msra.mxu0 0.0
    %695 = vmatprep.subr.mxu0 0.0
    %696 = vmatpush1.xpose.msra.mxu0 0.0
    %697 = vmatprep.subr.mxu0 0.0
    %698 = vmatpush1.xpose.msra.mxu0 0.0
    %699 = vmatprep.subr.mxu0 0.0
    %700 = vmatpush1.xpose.msra.mxu0 0.0
    %701 = vmatprep.subr.mxu0 0.0
    %702 = vmatpush1.xpose.msra.mxu0 0.0
    %703 = vmatprep.subr.mxu0 0.0
    %704 = vmatpush1.xpose.msra.mxu0 0.0
    %705 = vmatprep.subr.mxu0 0.0
    %706 = vmatpush1.xpose.msra.mxu0 0.0
    %707 = vmatprep.mubr.f32.mxu0 0.0
    %708 = vmatmul.mubr.f32.gmra.mrb[0].mxu0 %v639
    %v709 = vpop.f32.mrb[0].mxu0
    %v710 = vadd.f32 0.0, %v709
    %v711 = vpop.f32.mrb[0].mxu0
    %712 = vdwg.mxu0
    %713 = vrot.lane.b32.xlu0 %v169, 96
    %v714 = vpop.permute.xlu0 %713
    %v715 = vsel %vm182, %v169, 0
    %v717 = vsel %vm182, %v714, 0
    %719 = vmatprep.subr.mxu0 0.0
    %720 = vmatpush1.xpose.msra.mxu0 %v717
    %721 = vmatprep.subr.mxu0 0.0
    %722 = vmatpush1.xpose.msra.mxu0 0.0
    %723 = vmatprep.subr.mxu0 0.0
    %724 = vmatpush1.xpose.msra.mxu0 0.0
    %725 = vmatprep.subr.mxu0 0.0
    %726 = vmatpush1.xpose.msra.mxu0 0.0
    %727 = vmatprep.subr.mxu0 0.0
    %728 = vmatpush1.xpose.msra.mxu0 0.0
    %729 = vmatprep.subr.mxu0 0.0
    %730 = vmatpush1.xpose.msra.mxu0 0.0
    %731 = vmatprep.subr.mxu0 0.0
    %732 = vmatpush1.xpose.msra.mxu0 0.0
    %733 = vmatprep.subr.mxu0 0.0
    %734 = vmatpush1.xpose.msra.mxu0 0.0
    %735 = vmatprep.subr.mxu0 0.0
    %736 = vmatpush1.xpose.msra.mxu0 0.0
    %737 = vmatprep.subr.mxu0 0.0
    %738 = vmatpush1.xpose.msra.mxu0 0.0
    %739 = vmatprep.subr.mxu0 0.0
    %740 = vmatpush1.xpose.msra.mxu0 0.0
    %741 = vmatprep.subr.mxu0 0.0
    %742 = vmatpush1.xpose.msra.mxu0 0.0
    %743 = vmatprep.subr.mxu0 0.0
    %744 = vmatpush1.xpose.msra.mxu0 0.0
    %745 = vmatprep.subr.mxu0 0.0
    %746 = vmatpush1.xpose.msra.mxu0 0.0
    %747 = vmatprep.subr.mxu0 0.0
    %748 = vmatpush1.xpose.msra.mxu0 0.0
    %749 = vmatprep.subr.mxu0 0.0
    %750 = vmatpush1.xpose.msra.mxu0 0.0
    %751 = vmatprep.subr.mxu0 0.0
    %752 = vmatpush1.xpose.msra.mxu0 0.0
    %753 = vmatprep.subr.mxu0 0.0
    %754 = vmatpush1.xpose.msra.mxu0 0.0
    %755 = vmatprep.subr.mxu0 0.0
    %756 = vmatpush1.xpose.msra.mxu0 0.0
    %757 = vmatprep.subr.mxu0 0.0
    %758 = vmatpush1.xpose.msra.mxu0 0.0
    %759 = vmatprep.subr.mxu0 0.0
    %760 = vmatpush1.xpose.msra.mxu0 0.0
    %761 = vmatprep.subr.mxu0 0.0
    %762 = vmatpush1.xpose.msra.mxu0 0.0
    %763 = vmatprep.subr.mxu0 0.0
    %764 = vmatpush1.xpose.msra.mxu0 0.0
    %765 = vmatprep.subr.mxu0 0.0
    %766 = vmatpush1.xpose.msra.mxu0 0.0
    %767 = vmatprep.subr.mxu0 0.0
    %768 = vmatpush1.xpose.msra.mxu0 0.0
    %769 = vmatprep.subr.mxu0 0.0
    %770 = vmatpush1.xpose.msra.mxu0 0.0
    %771 = vmatprep.subr.mxu0 0.0
    %772 = vmatpush1.xpose.msra.mxu0 0.0
    %773 = vmatprep.subr.mxu0 0.0
    %774 = vmatpush1.xpose.msra.mxu0 0.0
    %775 = vmatprep.subr.mxu0 0.0
    %776 = vmatpush1.xpose.msra.mxu0 0.0
    %777 = vmatprep.subr.mxu0 0.0
    %778 = vmatpush1.xpose.msra.mxu0 0.0
    %779 = vmatprep.subr.mxu0 0.0
    %780 = vmatpush1.xpose.msra.mxu0 0.0
    %781 = vmatprep.subr.mxu0 0.0
    %782 = vmatpush1.xpose.msra.mxu0 0.0
    %783 = vmatprep.mubr.f32.mxu0 0.0
    %784 = vmatmul.mubr.f32.gmra.mrb[0].mxu0 %v715
    %v785 = vpop.f32.mrb[0].mxu0
    %v786 = vadd.f32 0.0, %v785
    %v787 = vpop.f32.mrb[0].mxu0
    %788 = vdwg.mxu0
    %v789 = vmul.f32 %v254, 0.35355338
    %v790 = vmul.f32 %v330, 0.35355338
    %v791 = vmul.f32 %v406, 0.35355338
    %v792 = vmul.f32 %v482, 0.35355338
    %v793 = vmul.f32 %v558, 0.35355338
    %v794 = vmul.f32 %v634, 0.35355338
    %v795 = vmul.f32 %v710, 0.35355338
    %v796 = vmul.f32 %v786, 0.35355338
    %v797 = vadd.f32 %v789, %v176
    %v798 = vadd.f32 %v790, %v177
    %v799 = vadd.f32 %v791, %v178
    %v800 = vadd.f32 %v792, %v179
    %v801 = vadd.f32 %v793, %v176
    %v802 = vadd.f32 %v794, %v177
    %v803 = vadd.f32 %v795, %v178
    %v804 = vadd.f32 %v796, %v179
    %v805 = vsel %vm182, %v797, -inf
    %806 = vmax.xlane.f32.xlu0 %v805
    %v807 = vpop.xlane.xlu0 %806
    %v808 = vsel %vm182, %v798, -inf
    %809 = vmax.xlane.f32.xlu0 %v808
    %v810 = vpop.xlane.xlu0 %809
    %v811 = vsel %vm182, %v799, -inf
    %812 = vmax.xlane.f32.xlu0 %v811
    %v813 = vpop.xlane.xlu0 %812
    %v814 = vsel %vm182, %v800, -inf
    %815 = vmax.xlane.f32.xlu0 %v814
    %v816 = vpop.xlane.xlu0 %815
    %v817 = vsel %vm182, %v801, -inf
    %818 = vmax.xlane.f32.xlu0 %v817
    %v819 = vpop.xlane.xlu0 %818
    %v820 = vsel %vm182, %v802, -inf
    %821 = vmax.xlane.f32.xlu0 %v820
    %v822 = vpop.xlane.xlu0 %821
    %v823 = vsel %vm182, %v803, -inf
    %824 = vmax.xlane.f32.xlu0 %v823
    %v825 = vpop.xlane.xlu0 %824
    %v826 = vsel %vm182, %v804, -inf
    %827 = vmax.xlane.f32.xlu0 %v826
    %v828 = vpop.xlane.xlu0 %827
    %v829 = vsub.f32 %v797, %v807
    %v830 = vsub.f32 %v798, %v810
    %v831 = vsub.f32 %v799, %v813
    %v832 = vsub.f32 %v800, %v816
    %v833 = vsub.f32 %v801, %v819
    %v834 = vsub.f32 %v802, %v822
    %v835 = vsub.f32 %v803, %v825
    %v836 = vsub.f32 %v804, %v828
    %v837 = vmul.f32 %v829, 1.442695
    %v838 = vpow.pop %v837
    %v839 = vmul.f32 %v830, 1.442695
    %v840 = vpow.pop %v839
    %v841 = vmul.f32 %v831, 1.442695
    %v842 = vpow.pop %v841
    %v843 = vmul.f32 %v832, 1.442695
    %v844 = vpow.pop %v843
    %v845 = vmul.f32 %v833, 1.442695
    %v846 = vpow.pop %v845
    %v847 = vmul.f32 %v834, 1.442695
    %v848 = vpow.pop %v847
    %v849 = vmul.f32 %v835, 1.442695
    %v850 = vpow.pop %v849
    %v851 = vmul.f32 %v836, 1.442695
    %v852 = vpow.pop %v851
    %v853 = vsel %vm182, %v838, 0.0
    %854 = vadd.xlane.f32.xlu0 %v853
    %v855 = vpop.xlane.xlu0 %854
    %v856 = vsel %vm182, %v840, 0.0
    %857 = vadd.xlane.f32.xlu0 %v856
    %v858 = vpop.xlane.xlu0 %857
    %v859 = vsel %vm182, %v842, 0.0
    %860 = vadd.xlane.f32.xlu0 %v859
    %v861 = vpop.xlane.xlu0 %860
    %v862 = vsel %vm182, %v844, 0.0
    %863 = vadd.xlane.f32.xlu0 %v862
    %v864 = vpop.xlane.xlu0 %863
    %v865 = vsel %vm182, %v846, 0.0
    %866 = vadd.xlane.f32.xlu0 %v865
    %v867 = vpop.xlane.xlu0 %866
    %v868 = vsel %vm182, %v848, 0.0
    %869 = vadd.xlane.f32.xlu0 %v868
    %v870 = vpop.xlane.xlu0 %869
    %v871 = vsel %vm182, %v850, 0.0
    %872 = vadd.xlane.f32.xlu0 %v871
    %v873 = vpop.xlane.xlu0 %872
    %v874 = vsel %vm182, %v852, 0.0
    %875 = vadd.xlane.f32.xlu0 %v874
    %v876 = vpop.xlane.xlu0 %875
    %v877 = vrcp.pop %v855
    %v878 = vrcp.pop %v858
    %v879 = vrcp.pop %v861
    %v880 = vrcp.pop %v864
    %v881 = vrcp.pop %v867
    %v882 = vrcp.pop %v870
    %v883 = vrcp.pop %v873
    %v884 = vrcp.pop %v876
    %v885 = vmul.f32 %v838, %v877
    %v886 = vmul.f32 %v840, %v878
    %v887 = vmul.f32 %v842, %v879
    %v888 = vmul.f32 %v844, %v880
    %v889 = vmul.f32 %v846, %v881
    %v890 = vmul.f32 %v848, %v882
    %v891 = vmul.f32 %v850, %v883
    %v892 = vmul.f32 %v852, %v884
    %893 = vrot.lane.b32.xlu0 %v148, 64
    %v894 = vpop.permute.xlu0 %893
    %v897 = vsel %vm182, %v885, 0
    %899 = vmatprep.subr.mxu0 0.0
    %900 = vmatpush1.msra.mxu0 %v894
    %901 = vmatprep.subr.mxu0 0.0
    %902 = vmatpush1.msra.mxu0 0.0
    %903 = vmatprep.subr.mxu0 0.0
    %904 = vmatpush1.msra.mxu0 0.0
    %905 = vmatprep.subr.mxu0 0.0
    %906 = vmatpush1.msra.mxu0 0.0
    %907 = vmatprep.subr.mxu0 0.0
    %908 = vmatpush1.msra.mxu0 0.0
    %909 = vmatprep.subr.mxu0 0.0
    %910 = vmatpush1.msra.mxu0 0.0
    %911 = vmatprep.subr.mxu0 0.0
    %912 = vmatpush1.msra.mxu0 0.0
    %913 = vmatprep.subr.mxu0 0.0
    %914 = vmatpush1.msra.mxu0 0.0
    %915 = vmatprep.subr.mxu0 0.0
    %916 = vmatpush1.msra.mxu0 0.0
    %917 = vmatprep.subr.mxu0 0.0
    %918 = vmatpush1.msra.mxu0 0.0
    %919 = vmatprep.subr.mxu0 0.0
    %920 = vmatpush1.msra.mxu0 0.0
    %921 = vmatprep.subr.mxu0 0.0
    %922 = vmatpush1.msra.mxu0 0.0
    %923 = vmatprep.subr.mxu0 0.0
    %924 = vmatpush1.msra.mxu0 0.0
    %925 = vmatprep.subr.mxu0 0.0
    %926 = vmatpush1.msra.mxu0 0.0
    %927 = vmatprep.subr.mxu0 0.0
    %928 = vmatpush1.msra.mxu0 0.0
    %929 = vmatprep.subr.mxu0 0.0
    %930 = vmatpush1.msra.mxu0 0.0
    %931 = vmatprep.subr.mxu0 0.0
    %932 = vmatpush1.msra.mxu0 0.0
    %933 = vmatprep.subr.mxu0 0.0
    %934 = vmatpush1.msra.mxu0 0.0
    %935 = vmatprep.subr.mxu0 0.0
    %936 = vmatpush1.msra.mxu0 0.0
    %937 = vmatprep.subr.mxu0 0.0
    %938 = vmatpush1.msra.mxu0 0.0
    %939 = vmatprep.subr.mxu0 0.0
    %940 = vmatpush1.msra.mxu0 0.0
    %941 = vmatprep.subr.mxu0 0.0
    %942 = vmatpush1.msra.mxu0 0.0
    %943 = vmatprep.subr.mxu0 0.0
    %944 = vmatpush1.msra.mxu0 0.0
    %945 = vmatprep.subr.mxu0 0.0
    %946 = vmatpush1.msra.mxu0 0.0
    %947 = vmatprep.subr.mxu0 0.0
    %948 = vmatpush1.msra.mxu0 0.0
    %949 = vmatprep.subr.mxu0 0.0
    %950 = vmatpush1.msra.mxu0 0.0
    %951 = vmatprep.subr.mxu0 0.0
    %952 = vmatpush1.msra.mxu0 0.0
    %953 = vmatprep.subr.mxu0 0.0
    %954 = vmatpush1.msra.mxu0 0.0
    %955 = vmatprep.subr.mxu0 0.0
    %956 = vmatpush1.msra.mxu0 0.0
    %957 = vmatprep.subr.mxu0 0.0
    %958 = vmatpush1.msra.mxu0 0.0
    %959 = vmatprep.subr.mxu0 0.0
    %960 = vmatpush1.msra.mxu0 0.0
    %961 = vmatprep.subr.mxu0 0.0
    %962 = vmatpush1.msra.mxu0 0.0
    %963 = vmatprep.mubr.f32.mxu0 0.0
    %964 = vmatmul.mubr.f32.gmra.mrb[0].mxu0 %v897
    %v965 = vpop.f32.mrb[0].mxu0
    %v966 = vadd.f32 0.0, %v965
    %v967 = vpop.f32.mrb[0].mxu0
    %968 = vdwg.mxu0
    %969 = vrot.lane.b32.xlu0 %v158, 64
    %v970 = vpop.permute.xlu0 %969
    %v973 = vsel %vm182, %v886, 0
    %975 = vmatprep.subr.mxu0 0.0
    %976 = vmatpush1.msra.mxu0 %v970
    %977 = vmatprep.subr.mxu0 0.0
    %978 = vmatpush1.msra.mxu0 0.0
    %979 = vmatprep.subr.mxu0 0.0
    %980 = vmatpush1.msra.mxu0 0.0
    %981 = vmatprep.subr.mxu0 0.0
    %982 = vmatpush1.msra.mxu0 0.0
    %983 = vmatprep.subr.mxu0 0.0
    %984 = vmatpush1.msra.mxu0 0.0
    %985 = vmatprep.subr.mxu0 0.0
    %986 = vmatpush1.msra.mxu0 0.0
    %987 = vmatprep.subr.mxu0 0.0
    %988 = vmatpush1.msra.mxu0 0.0
    %989 = vmatprep.subr.mxu0 0.0
    %990 = vmatpush1.msra.mxu0 0.0
    %991 = vmatprep.subr.mxu0 0.0
    %992 = vmatpush1.msra.mxu0 0.0
    %993 = vmatprep.subr.mxu0 0.0
    %994 = vmatpush1.msra.mxu0 0.0
    %995 = vmatprep.subr.mxu0 0.0
    %996 = vmatpush1.msra.mxu0 0.0
    %997 = vmatprep.subr.mxu0 0.0
    %998 = vmatpush1.msra.mxu0 0.0
    %999 = vmatprep.subr.mxu0 0.0
    %1000 = vmatpush1.msra.mxu0 0.0
    %1001 = vmatprep.subr.mxu0 0.0
    %1002 = vmatpush1.msra.mxu0 0.0
    %1003 = vmatprep.subr.mxu0 0.0
    %1004 = vmatpush1.msra.mxu0 0.0
    %1005 = vmatprep.subr.mxu0 0.0
    %1006 = vmatpush1.msra.mxu0 0.0
    %1007 = vmatprep.subr.mxu0 0.0
    %1008 = vmatpush1.msra.mxu0 0.0
    %1009 = vmatprep.subr.mxu0 0.0
    %1010 = vmatpush1.msra.mxu0 0.0
    %1011 = vmatprep.subr.mxu0 0.0
    %1012 = vmatpush1.msra.mxu0 0.0
    %1013 = vmatprep.subr.mxu0 0.0
    %1014 = vmatpush1.msra.mxu0 0.0
    %1015 = vmatprep.subr.mxu0 0.0
    %1016 = vmatpush1.msra.mxu0 0.0
    %1017 = vmatprep.subr.mxu0 0.0
    %1018 = vmatpush1.msra.mxu0 0.0
    %1019 = vmatprep.subr.mxu0 0.0
    %1020 = vmatpush1.msra.mxu0 0.0
    %1021 = vmatprep.subr.mxu0 0.0
    %1022 = vmatpush1.msra.mxu0 0.0
    %1023 = vmatprep.subr.mxu0 0.0
    %1024 = vmatpush1.msra.mxu0 0.0
    %1025 = vmatprep.subr.mxu0 0.0
    %1026 = vmatpush1.msra.mxu0 0.0
    %1027 = vmatprep.subr.mxu0 0.0
    %1028 = vmatpush1.msra.mxu0 0.0
    %1029 = vmatprep.subr.mxu0 0.0
    %1030 = vmatpush1.msra.mxu0 0.0
    %1031 = vmatprep.subr.mxu0 0.0
    %1032 = vmatpush1.msra.mxu0 0.0
    %1033 = vmatprep.subr.mxu0 0.0
    %1034 = vmatpush1.msra.mxu0 0.0
    %1035 = vmatprep.subr.mxu0 0.0
    %1036 = vmatpush1.msra.mxu0 0.0
    %1037 = vmatprep.subr.mxu0 0.0
    %1038 = vmatpush1.msra.mxu0 0.0
    %1039 = vmatprep.mubr.f32.mxu0 0.0
    %1040 = vmatmul.mubr.f32.gmra.mrb[0].mxu0 %v973
    %v1041 = vpop.f32.mrb[0].mxu0
    %v1042 = vadd.f32 0.0, %v1041
    %v1043 = vpop.f32.mrb[0].mxu0
    %1044 = vdwg.mxu0
    %1045 = vrot.lane.b32.xlu0 %v160, 64
    %v1046 = vpop.permute.xlu0 %1045
    %v1049 = vsel %vm182, %v887, 0
    %1051 = vmatprep.subr.mxu0 0.0
    %1052 = vmatpush1.msra.mxu0 %v1046
    %1053 = vmatprep.subr.mxu0 0.0
    %1054 = vmatpush1.msra.mxu0 0.0
    %1055 = vmatprep.subr.mxu0 0.0
    %1056 = vmatpush1.msra.mxu0 0.0
    %1057 = vmatprep.subr.mxu0 0.0
    %1058 = vmatpush1.msra.mxu0 0.0
    %1059 = vmatprep.subr.mxu0 0.0
    %1060 = vmatpush1.msra.mxu0 0.0
    %1061 = vmatprep.subr.mxu0 0.0
    %1062 = vmatpush1.msra.mxu0 0.0
    %1063 = vmatprep.subr.mxu0 0.0
    %1064 = vmatpush1.msra.mxu0 0.0
    %1065 = vmatprep.subr.mxu0 0.0
    %1066 = vmatpush1.msra.mxu0 0.0
    %1067 = vmatprep.subr.mxu0 0.0
    %1068 = vmatpush1.msra.mxu0 0.0
    %1069 = vmatprep.subr.mxu0 0.0
    %1070 = vmatpush1.msra.mxu0 0.0
    %1071 = vmatprep.subr.mxu0 0.0
    %1072 = vmatpush1.msra.mxu0 0.0
    %1073 = vmatprep.subr.mxu0 0.0
    %1074 = vmatpush1.msra.mxu0 0.0
    %1075 = vmatprep.subr.mxu0 0.0
    %1076 = vmatpush1.msra.mxu0 0.0
    %1077 = vmatprep.subr.mxu0 0.0
    %1078 = vmatpush1.msra.mxu0 0.0
    %1079 = vmatprep.subr.mxu0 0.0
    %1080 = vmatpush1.msra.mxu0 0.0
    %1081 = vmatprep.subr.mxu0 0.0
    %1082 = vmatpush1.msra.mxu0 0.0
    %1083 = vmatprep.subr.mxu0 0.0
    %1084 = vmatpush1.msra.mxu0 0.0
    %1085 = vmatprep.subr.mxu0 0.0
    %1086 = vmatpush1.msra.mxu0 0.0
    %1087 = vmatprep.subr.mxu0 0.0
    %1088 = vmatpush1.msra.mxu0 0.0
    %1089 = vmatprep.subr.mxu0 0.0
    %1090 = vmatpush1.msra.mxu0 0.0
    %1091 = vmatprep.subr.mxu0 0.0
    %1092 = vmatpush1.msra.mxu0 0.0
    %1093 = vmatprep.subr.mxu0 0.0
    %1094 = vmatpush1.msra.mxu0 0.0
    %1095 = vmatprep.subr.mxu0 0.0
    %1096 = vmatpush1.msra.mxu0 0.0
    %1097 = vmatprep.subr.mxu0 0.0
    %1098 = vmatpush1.msra.mxu0 0.0
    %1099 = vmatprep.subr.mxu0 0.0
    %1100 = vmatpush1.msra.mxu0 0.0
    %1101 = vmatprep.subr.mxu0 0.0
    %1102 = vmatpush1.msra.mxu0 0.0
    %1103 = vmatprep.subr.mxu0 0.0
    %1104 = vmatpush1.msra.mxu0 0.0
    %1105 = vmatprep.subr.mxu0 0.0
    %1106 = vmatpush1.msra.mxu0 0.0
    %1107 = vmatprep.subr.mxu0 0.0
    %1108 = vmatpush1.msra.mxu0 0.0
    %1109 = vmatprep.subr.mxu0 0.0
    %1110 = vmatpush1.msra.mxu0 0.0
    %1111 = vmatprep.subr.mxu0 0.0
    %1112 = vmatpush1.msra.mxu0 0.0
    %1113 = vmatprep.subr.mxu0 0.0
    %1114 = vmatpush1.msra.mxu0 0.0
    %1115 = vmatprep.mubr.f32.mxu0 0.0
    %1116 = vmatmul.mubr.f32.gmra.mrb[0].mxu0 %v1049
    %v1117 = vpop.f32.mrb[0].mxu0
    %v1118 = vadd.f32 0.0, %v1117
    %v1119 = vpop.f32.mrb[0].mxu0
    %1120 = vdwg.mxu0
    %1121 = vrot.lane.b32.xlu0 %v162, 64
    %v1122 = vpop.permute.xlu0 %1121
    %v1125 = vsel %vm182, %v888, 0
    %1127 = vmatprep.subr.mxu0 0.0
    %1128 = vmatpush1.msra.mxu0 %v1122
    %1129 = vmatprep.subr.mxu0 0.0
    %1130 = vmatpush1.msra.mxu0 0.0
    %1131 = vmatprep.subr.mxu0 0.0
    %1132 = vmatpush1.msra.mxu0 0.0
    %1133 = vmatprep.subr.mxu0 0.0
    %1134 = vmatpush1.msra.mxu0 0.0
    %1135 = vmatprep.subr.mxu0 0.0
    %1136 = vmatpush1.msra.mxu0 0.0
    %1137 = vmatprep.subr.mxu0 0.0
    %1138 = vmatpush1.msra.mxu0 0.0
    %1139 = vmatprep.subr.mxu0 0.0
    %1140 = vmatpush1.msra.mxu0 0.0
    %1141 = vmatprep.subr.mxu0 0.0
    %1142 = vmatpush1.msra.mxu0 0.0
    %1143 = vmatprep.subr.mxu0 0.0
    %1144 = vmatpush1.msra.mxu0 0.0
    %1145 = vmatprep.subr.mxu0 0.0
    %1146 = vmatpush1.msra.mxu0 0.0
    %1147 = vmatprep.subr.mxu0 0.0
    %1148 = vmatpush1.msra.mxu0 0.0
    %1149 = vmatprep.subr.mxu0 0.0
    %1150 = vmatpush1.msra.mxu0 0.0
    %1151 = vmatprep.subr.mxu0 0.0
    %1152 = vmatpush1.msra.mxu0 0.0
    %1153 = vmatprep.subr.mxu0 0.0
    %1154 = vmatpush1.msra.mxu0 0.0
    %1155 = vmatprep.subr.mxu0 0.0
    %1156 = vmatpush1.msra.mxu0 0.0
    %1157 = vmatprep.subr.mxu0 0.0
    %1158 = vmatpush1.msra.mxu0 0.0
    %1159 = vmatprep.subr.mxu0 0.0
    %1160 = vmatpush1.msra.mxu0 0.0
    %1161 = vmatprep.subr.mxu0 0.0
    %1162 = vmatpush1.msra.mxu0 0.0
    %1163 = vmatprep.subr.mxu0 0.0
    %1164 = vmatpush1.msra.mxu0 0.0
    %1165 = vmatprep.subr.mxu0 0.0
    %1166 = vmatpush1.msra.mxu0 0.0
    %1167 = vmatprep.subr.mxu0 0.0
    %1168 = vmatpush1.msra.mxu0 0.0
    %1169 = vmatprep.subr.mxu0 0.0
    %1170 = vmatpush1.msra.mxu0 0.0
    %1171 = vmatprep.subr.mxu0 0.0
    %1172 = vmatpush1.msra.mxu0 0.0
    %1173 = vmatprep.subr.mxu0 0.0
    %1174 = vmatpush1.msra.mxu0 0.0
    %1175 = vmatprep.subr.mxu0 0.0
    %1176 = vmatpush1.msra.mxu0 0.0
    %1177 = vmatprep.subr.mxu0 0.0
    %1178 = vmatpush1.msra.mxu0 0.0
    %1179 = vmatprep.subr.mxu0 0.0
    %1180 = vmatpush1.msra.mxu0 0.0
    %1181 = vmatprep.subr.mxu0 0.0
    %1182 = vmatpush1.msra.mxu0 0.0
    %1183 = vmatprep.subr.mxu0 0.0
    %1184 = vmatpush1.msra.mxu0 0.0
    %1185 = vmatprep.subr.mxu0 0.0
    %1186 = vmatpush1.msra.mxu0 0.0
    %1187 = vmatprep.subr.mxu0 0.0
    %1188 = vmatpush1.msra.mxu0 0.0
    %1189 = vmatprep.subr.mxu0 0.0
    %1190 = vmatpush1.msra.mxu0 0.0
    %1191 = vmatprep.mubr.f32.mxu0 0.0
    %1192 = vmatmul.mubr.f32.gmra.mrb[0].mxu0 %v1125
    %v1193 = vpop.f32.mrb[0].mxu0
    %v1194 = vadd.f32 0.0, %v1193
    %v1195 = vpop.f32.mrb[0].mxu0
    %1196 = vdwg.mxu0
    %1197 = vrot.lane.b32.xlu0 %v153, 64
    %v1198 = vpop.permute.xlu0 %1197
    %v1201 = vsel %vm182, %v889, 0
    %1203 = vmatprep.subr.mxu0 0.0
    %1204 = vmatpush1.msra.mxu0 %v1198
    %1205 = vmatprep.subr.mxu0 0.0
    %1206 = vmatpush1.msra.mxu0 0.0
    %1207 = vmatprep.subr.mxu0 0.0
    %1208 = vmatpush1.msra.mxu0 0.0
    %1209 = vmatprep.subr.mxu0 0.0
    %1210 = vmatpush1.msra.mxu0 0.0
    %1211 = vmatprep.subr.mxu0 0.0
    %1212 = vmatpush1.msra.mxu0 0.0
    %1213 = vmatprep.subr.mxu0 0.0
    %1214 = vmatpush1.msra.mxu0 0.0
    %1215 = vmatprep.subr.mxu0 0.0
    %1216 = vmatpush1.msra.mxu0 0.0
    %1217 = vmatprep.subr.mxu0 0.0
    %1218 = vmatpush1.msra.mxu0 0.0
    %1219 = vmatprep.subr.mxu0 0.0
    %1220 = vmatpush1.msra.mxu0 0.0
    %1221 = vmatprep.subr.mxu0 0.0
    %1222 = vmatpush1.msra.mxu0 0.0
    %1223 = vmatprep.subr.mxu0 0.0
    %1224 = vmatpush1.msra.mxu0 0.0
    %1225 = vmatprep.subr.mxu0 0.0
    %1226 = vmatpush1.msra.mxu0 0.0
    %1227 = vmatprep.subr.mxu0 0.0
    %1228 = vmatpush1.msra.mxu0 0.0
    %1229 = vmatprep.subr.mxu0 0.0
    %1230 = vmatpush1.msra.mxu0 0.0
    %1231 = vmatprep.subr.mxu0 0.0
    %1232 = vmatpush1.msra.mxu0 0.0
    %1233 = vmatprep.subr.mxu0 0.0
    %1234 = vmatpush1.msra.mxu0 0.0
    %1235 = vmatprep.subr.mxu0 0.0
    %1236 = vmatpush1.msra.mxu0 0.0
    %1237 = vmatprep.subr.mxu0 0.0
    %1238 = vmatpush1.msra.mxu0 0.0
    %1239 = vmatprep.subr.mxu0 0.0
    %1240 = vmatpush1.msra.mxu0 0.0
    %1241 = vmatprep.subr.mxu0 0.0
    %1242 = vmatpush1.msra.mxu0 0.0
    %1243 = vmatprep.subr.mxu0 0.0
    %1244 = vmatpush1.msra.mxu0 0.0
    %1245 = vmatprep.subr.mxu0 0.0
    %1246 = vmatpush1.msra.mxu0 0.0
    %1247 = vmatprep.subr.mxu0 0.0
    %1248 = vmatpush1.msra.mxu0 0.0
    %1249 = vmatprep.subr.mxu0 0.0
    %1250 = vmatpush1.msra.mxu0 0.0
    %1251 = vmatprep.subr.mxu0 0.0
    %1252 = vmatpush1.msra.mxu0 0.0
    %1253 = vmatprep.subr.mxu0 0.0
    %1254 = vmatpush1.msra.mxu0 0.0
    %1255 = vmatprep.subr.mxu0 0.0
    %1256 = vmatpush1.msra.mxu0 0.0
    %1257 = vmatprep.subr.mxu0 0.0
    %1258 = vmatpush1.msra.mxu0 0.0
    %1259 = vmatprep.subr.mxu0 0.0
    %1260 = vmatpush1.msra.mxu0 0.0
    %1261 = vmatprep.subr.mxu0 0.0
    %1262 = vmatpush1.msra.mxu0 0.0
    %1263 = vmatprep.subr.mxu0 0.0
    %1264 = vmatpush1.msra.mxu0 0.0
    %1265 = vmatprep.subr.mxu0 0.0
    %1266 = vmatpush1.msra.mxu0 0.0
    %1267 = vmatprep.mubr.f32.mxu0 0.0
    %1268 = vmatmul.mubr.f32.gmra.mrb[0].mxu0 %v1201
    %v1269 = vpop.f32.mrb[0].mxu0
    %v1270 = vadd.f32 0.0, %v1269
    %v1271 = vpop.f32.mrb[0].mxu0
    %1272 = vdwg.mxu0
    %1273 = vrot.lane.b32.xlu0 %v165, 64
    %v1274 = vpop.permute.xlu0 %1273
    %v1277 = vsel %vm182, %v890, 0
    %1279 = vmatprep.subr.mxu0 0.0
    %1280 = vmatpush1.msra.mxu0 %v1274
    %1281 = vmatprep.subr.mxu0 0.0
    %1282 = vmatpush1.msra.mxu0 0.0
    %1283 = vmatprep.subr.mxu0 0.0
    %1284 = vmatpush1.msra.mxu0 0.0
    %1285 = vmatprep.subr.mxu0 0.0
    %1286 = vmatpush1.msra.mxu0 0.0
    %1287 = vmatprep.subr.mxu0 0.0
    %1288 = vmatpush1.msra.mxu0 0.0
    %1289 = vmatprep.subr.mxu0 0.0
    %1290 = vmatpush1.msra.mxu0 0.0
    %1291 = vmatprep.subr.mxu0 0.0
    %1292 = vmatpush1.msra.mxu0 0.0
    %1293 = vmatprep.subr.mxu0 0.0
    %1294 = vmatpush1.msra.mxu0 0.0
    %1295 = vmatprep.subr.mxu0 0.0
    %1296 = vmatpush1.msra.mxu0 0.0
    %1297 = vmatprep.subr.mxu0 0.0
    %1298 = vmatpush1.msra.mxu0 0.0
    %1299 = vmatprep.subr.mxu0 0.0
    %1300 = vmatpush1.msra.mxu0 0.0
    %1301 = vmatprep.subr.mxu0 0.0
    %1302 = vmatpush1.msra.mxu0 0.0
    %1303 = vmatprep.subr.mxu0 0.0
    %1304 = vmatpush1.msra.mxu0 0.0
    %1305 = vmatprep.subr.mxu0 0.0
    %1306 = vmatpush1.msra.mxu0 0.0
    %1307 = vmatprep.subr.mxu0 0.0
    %1308 = vmatpush1.msra.mxu0 0.0
    %1309 = vmatprep.subr.mxu0 0.0
    %1310 = vmatpush1.msra.mxu0 0.0
    %1311 = vmatprep.subr.mxu0 0.0
    %1312 = vmatpush1.msra.mxu0 0.0
    %1313 = vmatprep.subr.mxu0 0.0
    %1314 = vmatpush1.msra.mxu0 0.0
    %1315 = vmatprep.subr.mxu0 0.0
    %1316 = vmatpush1.msra.mxu0 0.0
    %1317 = vmatprep.subr.mxu0 0.0
    %1318 = vmatpush1.msra.mxu0 0.0
    %1319 = vmatprep.subr.mxu0 0.0
    %1320 = vmatpush1.msra.mxu0 0.0
    %1321 = vmatprep.subr.mxu0 0.0
    %1322 = vmatpush1.msra.mxu0 0.0
    %1323 = vmatprep.subr.mxu0 0.0
    %1324 = vmatpush1.msra.mxu0 0.0
    %1325 = vmatprep.subr.mxu0 0.0
    %1326 = vmatpush1.msra.mxu0 0.0
    %1327 = vmatprep.subr.mxu0 0.0
    %1328 = vmatpush1.msra.mxu0 0.0
    %1329 = vmatprep.subr.mxu0 0.0
    %1330 = vmatpush1.msra.mxu0 0.0
    %1331 = vmatprep.subr.mxu0 0.0
    %1332 = vmatpush1.msra.mxu0 0.0
    %1333 = vmatprep.subr.mxu0 0.0
    %1334 = vmatpush1.msra.mxu0 0.0
    %1335 = vmatprep.subr.mxu0 0.0
    %1336 = vmatpush1.msra.mxu0 0.0
    %1337 = vmatprep.subr.mxu0 0.0
    %1338 = vmatpush1.msra.mxu0 0.0
    %1339 = vmatprep.subr.mxu0 0.0
    %1340 = vmatpush1.msra.mxu0 0.0
    %1341 = vmatprep.subr.mxu0 0.0
    %1342 = vmatpush1.msra.mxu0 0.0
    %1343 = vmatprep.mubr.f32.mxu0 0.0
    %1344 = vmatmul.mubr.f32.gmra.mrb[0].mxu0 %v1277
    %v1345 = vpop.f32.mrb[0].mxu0
    %v1346 = vadd.f32 0.0, %v1345
    %v1347 = vpop.f32.mrb[0].mxu0
    %1348 = vdwg.mxu0
    %1349 = vrot.lane.b32.xlu0 %v167, 64
    %v1350 = vpop.permute.xlu0 %1349
    %v1353 = vsel %vm182, %v891, 0
    %1355 = vmatprep.subr.mxu0 0.0
    %1356 = vmatpush1.msra.mxu0 %v1350
    %1357 = vmatprep.subr.mxu0 0.0
    %1358 = vmatpush1.msra.mxu0 0.0
    %1359 = vmatprep.subr.mxu0 0.0
    %1360 = vmatpush1.msra.mxu0 0.0
    %1361 = vmatprep.subr.mxu0 0.0
    %1362 = vmatpush1.msra.mxu0 0.0
    %1363 = vmatprep.subr.mxu0 0.0
    %1364 = vmatpush1.msra.mxu0 0.0
    %1365 = vmatprep.subr.mxu0 0.0
    %1366 = vmatpush1.msra.mxu0 0.0
    %1367 = vmatprep.subr.mxu0 0.0
    %1368 = vmatpush1.msra.mxu0 0.0
    %1369 = vmatprep.subr.mxu0 0.0
    %1370 = vmatpush1.msra.mxu0 0.0
    %1371 = vmatprep.subr.mxu0 0.0
    %1372 = vmatpush1.msra.mxu0 0.0
    %1373 = vmatprep.subr.mxu0 0.0
    %1374 = vmatpush1.msra.mxu0 0.0
    %1375 = vmatprep.subr.mxu0 0.0
    %1376 = vmatpush1.msra.mxu0 0.0
    %1377 = vmatprep.subr.mxu0 0.0
    %1378 = vmatpush1.msra.mxu0 0.0
    %1379 = vmatprep.subr.mxu0 0.0
    %1380 = vmatpush1.msra.mxu0 0.0
    %1381 = vmatprep.subr.mxu0 0.0
    %1382 = vmatpush1.msra.mxu0 0.0
    %1383 = vmatprep.subr.mxu0 0.0
    %1384 = vmatpush1.msra.mxu0 0.0
    %1385 = vmatprep.subr.mxu0 0.0
    %1386 = vmatpush1.msra.mxu0 0.0
    %1387 = vmatprep.subr.mxu0 0.0
    %1388 = vmatpush1.msra.mxu0 0.0
    %1389 = vmatprep.subr.mxu0 0.0
    %1390 = vmatpush1.msra.mxu0 0.0
    %1391 = vmatprep.subr.mxu0 0.0
    %1392 = vmatpush1.msra.mxu0 0.0
    %1393 = vmatprep.subr.mxu0 0.0
    %1394 = vmatpush1.msra.mxu0 0.0
    %1395 = vmatprep.subr.mxu0 0.0
    %1396 = vmatpush1.msra.mxu0 0.0
    %1397 = vmatprep.subr.mxu0 0.0
    %1398 = vmatpush1.msra.mxu0 0.0
    %1399 = vmatprep.subr.mxu0 0.0
    %1400 = vmatpush1.msra.mxu0 0.0
    %1401 = vmatprep.subr.mxu0 0.0
    %1402 = vmatpush1.msra.mxu0 0.0
    %1403 = vmatprep.subr.mxu0 0.0
    %1404 = vmatpush1.msra.mxu0 0.0
    %1405 = vmatprep.subr.mxu0 0.0
    %1406 = vmatpush1.msra.mxu0 0.0
    %1407 = vmatprep.subr.mxu0 0.0
    %1408 = vmatpush1.msra.mxu0 0.0
    %1409 = vmatprep.subr.mxu0 0.0
    %1410 = vmatpush1.msra.mxu0 0.0
    %1411 = vmatprep.subr.mxu0 0.0
    %1412 = vmatpush1.msra.mxu0 0.0
    %1413 = vmatprep.subr.mxu0 0.0
    %1414 = vmatpush1.msra.mxu0 0.0
    %1415 = vmatprep.subr.mxu0 0.0
    %1416 = vmatpush1.msra.mxu0 0.0
    %1417 = vmatprep.subr.mxu0 0.0
    %1418 = vmatpush1.msra.mxu0 0.0
    %1419 = vmatprep.mubr.f32.mxu0 0.0
    %1420 = vmatmul.mubr.f32.gmra.mrb[0].mxu0 %v1353
    %v1421 = vpop.f32.mrb[0].mxu0
    %v1422 = vadd.f32 0.0, %v1421
    %v1423 = vpop.f32.mrb[0].mxu0
    %1424 = vdwg.mxu0
    %1425 = vrot.lane.b32.xlu0 %v169, 64
    %v1426 = vpop.permute.xlu0 %1425
    %v1429 = vsel %vm182, %v892, 0
    %1431 = vmatprep.subr.mxu0 0.0
    %1432 = vmatpush1.msra.mxu0 %v1426
    %1433 = vmatprep.subr.mxu0 0.0
    %1434 = vmatpush1.msra.mxu0 0.0
    %1435 = vmatprep.subr.mxu0 0.0
    %1436 = vmatpush1.msra.mxu0 0.0
    %1437 = vmatprep.subr.mxu0 0.0
    %1438 = vmatpush1.msra.mxu0 0.0
    %1439 = vmatprep.subr.mxu0 0.0
    %1440 = vmatpush1.msra.mxu0 0.0
    %1441 = vmatprep.subr.mxu0 0.0
    %1442 = vmatpush1.msra.mxu0 0.0
    %1443 = vmatprep.subr.mxu0 0.0
    %1444 = vmatpush1.msra.mxu0 0.0
    %1445 = vmatprep.subr.mxu0 0.0
    %1446 = vmatpush1.msra.mxu0 0.0
    %1447 = vmatprep.subr.mxu0 0.0
    %1448 = vmatpush1.msra.mxu0 0.0
    %1449 = vmatprep.subr.mxu0 0.0
    %1450 = vmatpush1.msra.mxu0 0.0
    %1451 = vmatprep.subr.mxu0 0.0
    %1452 = vmatpush1.msra.mxu0 0.0
    %1453 = vmatprep.subr.mxu0 0.0
    %1454 = vmatpush1.msra.mxu0 0.0
    %1455 = vmatprep.subr.mxu0 0.0
    %1456 = vmatpush1.msra.mxu0 0.0
    %1457 = vmatprep.subr.mxu0 0.0
    %1458 = vmatpush1.msra.mxu0 0.0
    %1459 = vmatprep.subr.mxu0 0.0
    %1460 = vmatpush1.msra.mxu0 0.0
    %1461 = vmatprep.subr.mxu0 0.0
    %1462 = vmatpush1.msra.mxu0 0.0
    %1463 = vmatprep.subr.mxu0 0.0
    %1464 = vmatpush1.msra.mxu0 0.0
    %1465 = vmatprep.subr.mxu0 0.0
    %1466 = vmatpush1.msra.mxu0 0.0
    %1467 = vmatprep.subr.mxu0 0.0
    %1468 = vmatpush1.msra.mxu0 0.0
    %1469 = vmatprep.subr.mxu0 0.0
    %1470 = vmatpush1.msra.mxu0 0.0
    %1471 = vmatprep.subr.mxu0 0.0
    %1472 = vmatpush1.msra.mxu0 0.0
    %1473 = vmatprep.subr.mxu0 0.0
    %1474 = vmatpush1.msra.mxu0 0.0
    %1475 = vmatprep.subr.mxu0 0.0
    %1476 = vmatpush1.msra.mxu0 0.0
    %1477 = vmatprep.subr.mxu0 0.0
    %1478 = vmatpush1.msra.mxu0 0.0
    %1479 = vmatprep.subr.mxu0 0.0
    %1480 = vmatpush1.msra.mxu0 0.0
    %1481 = vmatprep.subr.mxu0 0.0
    %1482 = vmatpush1.msra.mxu0 0.0
    %1483 = vmatprep.subr.mxu0 0.0
    %1484 = vmatpush1.msra.mxu0 0.0
    %1485 = vmatprep.subr.mxu0 0.0
    %1486 = vmatpush1.msra.mxu0 0.0
    %1487 = vmatprep.subr.mxu0 0.0
    %1488 = vmatpush1.msra.mxu0 0.0
    %1489 = vmatprep.subr.mxu0 0.0
    %1490 = vmatpush1.msra.mxu0 0.0
    %1491 = vmatprep.subr.mxu0 0.0
    %1492 = vmatpush1.msra.mxu0 0.0
    %1493 = vmatprep.subr.mxu0 0.0
    %1494 = vmatpush1.msra.mxu0 0.0
    %1495 = vmatprep.mubr.f32.mxu0 0.0
    %1496 = vmatmul.mubr.f32.gmra.mrb[0].mxu0 %v1429
    %v1497 = vpop.f32.mrb[0].mxu0
    %v1498 = vadd.f32 0.0, %v1497
    %v1499 = vpop.f32.mrb[0].mxu0
    %1500 = vdwg.mxu0
    %1502 = vrot.lane.b32.xlu0 %v1042, 8
    %v1503 = vpop.permute.xlu0 %1502
    %1506 = vrot.lane.b32.xlu0 %v1118, 16
    %v1507 = vpop.permute.xlu0 %1506
    %1510 = vrot.lane.b32.xlu0 %v1194, 24
    %v1511 = vpop.permute.xlu0 %1510
    %v1513 = vsel %vm182, %v966, %v1503
    %vm1514 = vcmask 130048
    %v1515 = vsel %vm1514, %v1513, %v1507
    %vm1516 = vcmask 195584
    %v1517 = vsel %vm1516, %v1515, %v1511
    %1519 = vrot.lane.b32.xlu0 %v1346, 8
    %v1520 = vpop.permute.xlu0 %1519
    %1523 = vrot.lane.b32.xlu0 %v1422, 16
    %v1524 = vpop.permute.xlu0 %1523
    %1527 = vrot.lane.b32.xlu0 %v1498, 24
    %v1528 = vpop.permute.xlu0 %1527
    %v1530 = vsel %vm182, %v1270, %v1520
    %v1531 = vsel %vm1514, %v1530, %v1524
    %v1532 = vsel %vm1516, %v1531, %v1528
    %v1533 = vld [vmem:[%s2] sm:$0xff]
    %v1534 = vld [vmem:[%s2 + $0x8] sm:$0xff]
    %v1535 = vld [vmem:[%s2 + $0x10] sm:$0xff]
    %v1536 = vld [vmem:[%s2 + $0x18] sm:$0xff]
    %v1537 = vlaneseq
    %v1538 = vshrl.u32 %v1537, 7
    %v1539 = vsub.s32 2, %v1538
    %v1540 = vrot.slane %v26, %v1539
    %v1542 = vsel %vm27, %v1517, 0
    %v1545 = vsel %vm27, %v1532, 0
    %1547 = vmatprep.subr.mxu0 0.0
    %1548 = vmatpush1.msra.mxu0 %v1533
    %1549 = vmatprep.subr.mxu0 0.0
    %1550 = vmatpush1.msra.mxu0 %v1534
    %1551 = vmatprep.subr.mxu0 0.0
    %1552 = vmatpush1.msra.mxu0 %v1535
    %1553 = vmatprep.subr.mxu0 0.0
    %1554 = vmatpush1.msra.mxu0 %v1536
    %1555 = vmatprep.subr.mxu0 0.0
    %1556 = vmatpush1.msra.mxu0 0.0
    %1557 = vmatprep.subr.mxu0 0.0
    %1558 = vmatpush1.msra.mxu0 0.0
    %1559 = vmatprep.subr.mxu0 0.0
    %1560 = vmatpush1.msra.mxu0 0.0
    %1561 = vmatprep.subr.mxu0 0.0
    %1562 = vmatpush1.msra.mxu0 0.0
    %1563 = vmatprep.subr.mxu0 0.0
    %1564 = vmatpush1.msra.mxu0 0.0
    %1565 = vmatprep.subr.mxu0 0.0
    %1566 = vmatpush1.msra.mxu0 0.0
    %1567 = vmatprep.subr.mxu0 0.0
    %1568 = vmatpush1.msra.mxu0 0.0
    %1569 = vmatprep.subr.mxu0 0.0
    %1570 = vmatpush1.msra.mxu0 0.0
    %1571 = vmatprep.subr.mxu0 0.0
    %1572 = vmatpush1.msra.mxu0 0.0
    %1573 = vmatprep.subr.mxu0 0.0
    %1574 = vmatpush1.msra.mxu0 0.0
    %1575 = vmatprep.subr.mxu0 0.0
    %1576 = vmatpush1.msra.mxu0 0.0
    %1577 = vmatprep.subr.mxu0 0.0
    %1578 = vmatpush1.msra.mxu0 0.0
    %1579 = vmatprep.subr.mxu0 0.0
    %1580 = vmatpush1.msra.mxu0 0.0
    %1581 = vmatprep.subr.mxu0 0.0
    %1582 = vmatpush1.msra.mxu0 0.0
    %1583 = vmatprep.subr.mxu0 0.0
    %1584 = vmatpush1.msra.mxu0 0.0
    %1585 = vmatprep.subr.mxu0 0.0
    %1586 = vmatpush1.msra.mxu0 0.0
    %1587 = vmatprep.subr.mxu0 0.0
    %1588 = vmatpush1.msra.mxu0 0.0
    %1589 = vmatprep.subr.mxu0 0.0
    %1590 = vmatpush1.msra.mxu0 0.0
    %1591 = vmatprep.subr.mxu0 0.0
    %1592 = vmatpush1.msra.mxu0 0.0
    %1593 = vmatprep.subr.mxu0 0.0
    %1594 = vmatpush1.msra.mxu0 0.0
    %1595 = vmatprep.subr.mxu0 0.0
    %1596 = vmatpush1.msra.mxu0 0.0
    %1597 = vmatprep.subr.mxu0 0.0
    %1598 = vmatpush1.msra.mxu0 0.0
    %1599 = vmatprep.subr.mxu0 0.0
    %1600 = vmatpush1.msra.mxu0 0.0
    %1601 = vmatprep.subr.mxu0 0.0
    %1602 = vmatpush1.msra.mxu0 0.0
    %1603 = vmatprep.subr.mxu0 0.0
    %1604 = vmatpush1.msra.mxu0 0.0
    %1605 = vmatprep.subr.mxu0 0.0
    %1606 = vmatpush1.msra.mxu0 0.0
    %1607 = vmatprep.subr.mxu0 0.0
    %1608 = vmatpush1.msra.mxu0 0.0
    %1609 = vmatprep.subr.mxu0 0.0
    %1610 = vmatpush1.msra.mxu0 0.0
    %1611 = vmatprep.mubr.f32.mxu0 0.0
    %1612 = vmatmul.mubr.f32.gmra.mrb[0].mxu0 %v1542
    %v1613 = vpop.f32.mrb[0].mxu0
    %v1614 = vadd.f32 %v1540, %v1613
    %v1615 = vpop.f32.mrb[0].mxu0
    %1616 = vmatprep.mubr.f32.mxu0 0.0
    %1617 = vmatmul.mubr.f32.gmra.mrb[0].mxu0 %v1545
    %v1618 = vpop.f32.mrb[0].mxu0
    %v1619 = vadd.f32 %v1540, %v1618
    %v1620 = vpop.f32.mrb[0].mxu0
    %1621 = vdwg.mxu0
    %v1622 = vadd.f32 %v24, %v1614
    %v1623 = vadd.f32 %v25, %v1619
    %v1624 = vsel %vm27, %v1622, 0.0
    %1625 = vadd.xlane.f32.xlu0 %v1624
    %v1626 = vpop.xlane.xlu0 %1625
    %v1627 = vsel %vm27, %v1623, 0.0
    %1628 = vadd.xlane.f32.xlu0 %v1627
    %v1629 = vpop.xlane.xlu0 %1628
    %v1630 = vmul.f32 %v1626, %v34
    %v1631 = vmul.f32 %v1629, %v34
    %v1632 = vsub.f32 %v1622, %v1630
    %v1633 = vsub.f32 %v1623, %v1631
    %v1634 = vmul.f32 %v1632, %v1632
    %v1635 = vmul.f32 %v1633, %v1633
    %v1636 = vsel %vm27, %v1634, 0.0
    %1637 = vadd.xlane.f32.xlu0 %v1636
    %v1638 = vpop.xlane.xlu0 %1637
    %v1639 = vsel %vm27, %v1635, 0.0
    %1640 = vadd.xlane.f32.xlu0 %v1639
    %v1641 = vpop.xlane.xlu0 %1640
    %v1642 = vmul.f32 %v1638, %v34
    %v1643 = vmul.f32 %v1641, %v34
    %v1644 = vadd.f32 %v1642, 1e-05
    %v1645 = vadd.f32 %v1643, 1e-05
    %v1646 = vrsqrt.pop %v1644
    %v1647 = vrsqrt.pop %v1645
    %v1648 = vmul.f32 %v1632, %v1646
    %v1649 = vmul.f32 %v1633, %v1647
    %1650 = vrot.lane.b32.xlu0 %v58, 64
    %v1651 = vpop.permute.xlu0 %1650
    %v1653 = vmul.f32 %v1648, %v1651
    %v1654 = vmul.f32 %v1649, %v1651
    %1655 = vrot.lane.b32.xlu0 %v58, 32
    %v1656 = vpop.permute.xlu0 %1655
    %v1658 = vadd.f32 %v1653, %v1656
    %v1659 = vadd.f32 %v1654, %v1656
    %v1660 = vld [vmem:[%s3] sm:$0xff]
    %v1661 = vld [vmem:[%s3 + $0x8] sm:$0xff]
    %v1662 = vld [vmem:[%s3 + $0x10] sm:$0xff]
    %v1663 = vld [vmem:[%s3 + $0x18] sm:$0xff]
    %v1664 = vlaneseq
    %v1665 = vshrl.u32 %v1664, 7
    %v1666 = vsub.s32 4, %v1665
    %v1667 = vrot.slane %v26, %v1666
    %v1669 = vsel %vm27, %v1658, 0
    %v1672 = vsel %vm27, %v1659, 0
    %1674 = vmatprep.subr.mxu0 0.0
    %1675 = vmatpush1.msra.mxu0 %v1660
    %1676 = vmatprep.subr.mxu0 0.0
    %1677 = vmatpush1.msra.mxu0 %v1661
    %1678 = vmatprep.subr.mxu0 0.0
    %1679 = vmatpush1.msra.mxu0 %v1662
    %1680 = vmatprep.subr.mxu0 0.0
    %1681 = vmatpush1.msra.mxu0 %v1663
    %1682 = vmatprep.subr.mxu0 0.0
    %1683 = vmatpush1.msra.mxu0 0.0
    %1684 = vmatprep.subr.mxu0 0.0
    %1685 = vmatpush1.msra.mxu0 0.0
    %1686 = vmatprep.subr.mxu0 0.0
    %1687 = vmatpush1.msra.mxu0 0.0
    %1688 = vmatprep.subr.mxu0 0.0
    %1689 = vmatpush1.msra.mxu0 0.0
    %1690 = vmatprep.subr.mxu0 0.0
    %1691 = vmatpush1.msra.mxu0 0.0
    %1692 = vmatprep.subr.mxu0 0.0
    %1693 = vmatpush1.msra.mxu0 0.0
    %1694 = vmatprep.subr.mxu0 0.0
    %1695 = vmatpush1.msra.mxu0 0.0
    %1696 = vmatprep.subr.mxu0 0.0
    %1697 = vmatpush1.msra.mxu0 0.0
    %1698 = vmatprep.subr.mxu0 0.0
    %1699 = vmatpush1.msra.mxu0 0.0
    %1700 = vmatprep.subr.mxu0 0.0
    %1701 = vmatpush1.msra.mxu0 0.0
    %1702 = vmatprep.subr.mxu0 0.0
    %1703 = vmatpush1.msra.mxu0 0.0
    %1704 = vmatprep.subr.mxu0 0.0
    %1705 = vmatpush1.msra.mxu0 0.0
    %1706 = vmatprep.subr.mxu0 0.0
    %1707 = vmatpush1.msra.mxu0 0.0
    %1708 = vmatprep.subr.mxu0 0.0
    %1709 = vmatpush1.msra.mxu0 0.0
    %1710 = vmatprep.subr.mxu0 0.0
    %1711 = vmatpush1.msra.mxu0 0.0
    %1712 = vmatprep.subr.mxu0 0.0
    %1713 = vmatpush1.msra.mxu0 0.0
    %1714 = vmatprep.subr.mxu0 0.0
    %1715 = vmatpush1.msra.mxu0 0.0
    %1716 = vmatprep.subr.mxu0 0.0
    %1717 = vmatpush1.msra.mxu0 0.0
    %1718 = vmatprep.subr.mxu0 0.0
    %1719 = vmatpush1.msra.mxu0 0.0
    %1720 = vmatprep.subr.mxu0 0.0
    %1721 = vmatpush1.msra.mxu0 0.0
    %1722 = vmatprep.subr.mxu0 0.0
    %1723 = vmatpush1.msra.mxu0 0.0
    %1724 = vmatprep.subr.mxu0 0.0
    %1725 = vmatpush1.msra.mxu0 0.0
    %1726 = vmatprep.subr.mxu0 0.0
    %1727 = vmatpush1.msra.mxu0 0.0
    %1728 = vmatprep.subr.mxu0 0.0
    %1729 = vmatpush1.msra.mxu0 0.0
    %1730 = vmatprep.subr.mxu0 0.0
    %1731 = vmatpush1.msra.mxu0 0.0
    %1732 = vmatprep.subr.mxu0 0.0
    %1733 = vmatpush1.msra.mxu0 0.0
    %1734 = vmatprep.subr.mxu0 0.0
    %1735 = vmatpush1.msra.mxu0 0.0
    %1736 = vmatprep.subr.mxu0 0.0
    %1737 = vmatpush1.msra.mxu0 0.0
    %1738 = vmatprep.mubr.f32.mxu0 0.0
    %1739 = vmatmul.mubr.f32.gmra.mrb[0].mxu0 %v1669
    %v1740 = vpop.f32.mrb[0].mxu0
    %v1741 = vadd.f32 %v1667, %v1740
    %v1742 = vpop.f32.mrb[0].mxu0
    %1743 = vmatprep.mubr.f32.mxu0 0.0
    %1744 = vmatmul.mubr.f32.gmra.mrb[0].mxu0 %v1672
    %v1745 = vpop.f32.mrb[0].mxu0
    %v1746 = vadd.f32 %v1667, %v1745
    %v1747 = vpop.f32.mrb[0].mxu0
    %1748 = vdwg.mxu0
    %v1749 = vmul.f32 %v1741, 0.5
    %v1750 = vmul.f32 %v1746, 0.5
    %v1751 = vmul.f32 %v1741, 0.044715
    %v1752 = vmul.f32 %v1746, 0.044715
    %v1753 = vmul.f32 %v1751, %v1741
    %v1754 = vmul.f32 %v1752, %v1746
    %v1755 = vmul.f32 %v1753, %v1741
    %v1756 = vmul.f32 %v1754, %v1746
    %v1757 = vadd.f32 %v1741, %v1755
    %v1758 = vadd.f32 %v1746, %v1756
    %v1759 = vmul.f32 %v1757, 0.7978846
    %v1760 = vmul.f32 %v1758, 0.7978846
    %v1761 = vtanh.pop %v1759
    %v1762 = vtanh.pop %v1760
    %v1763 = vadd.f32 %v1761, 1.0
    %v1764 = vadd.f32 %v1762, 1.0
    %v1765 = vmul.f32 %v1749, %v1763
    %v1766 = vmul.f32 %v1750, %v1764
    %v1767 = vld [vmem:[%s4] sm:$0xff]
    %v1768 = vld [vmem:[%s4 + $0x8] sm:$0xff]
    %v1769 = vld [vmem:[%s4 + $0x10] sm:$0xff]
    %v1770 = vld [vmem:[%s4 + $0x18] sm:$0xff]
    %v1771 = vld [vmem:[%s4 + $0x20] sm:$0xff]
    %v1772 = vld [vmem:[%s4 + $0x28] sm:$0xff]
    %v1773 = vld [vmem:[%s4 + $0x30] sm:$0xff]
    %v1774 = vld [vmem:[%s4 + $0x38] sm:$0xff]
    %v1775 = vld [vmem:[%s4 + $0x40] sm:$0xff]
    %v1776 = vld [vmem:[%s4 + $0x48] sm:$0xff]
    %v1777 = vld [vmem:[%s4 + $0x50] sm:$0xff]
    %v1778 = vld [vmem:[%s4 + $0x58] sm:$0xff]
    %v1779 = vld [vmem:[%s4 + $0x60] sm:$0xff]
    %v1780 = vld [vmem:[%s4 + $0x68] sm:$0xff]
    %v1781 = vld [vmem:[%s4 + $0x70] sm:$0xff]
    %v1782 = vld [vmem:[%s4 + $0x78] sm:$0xff]
    %v1783 = vlaneseq
    %v1784 = vshrl.u32 %v1783, 7
    %v1785 = vsub.s32 3, %v1784
    %v1786 = vrot.slane %v26, %v1785
    %1787 = vmatprep.subr.mxu0 0.0
    %1788 = vmatpush1.msra.mxu0 %v1767
    %1789 = vmatprep.subr.mxu0 0.0
    %1790 = vmatpush1.msra.mxu0 %v1768
    %1791 = vmatprep.subr.mxu0 0.0
    %1792 = vmatpush1.msra.mxu0 %v1769
    %1793 = vmatprep.subr.mxu0 0.0
    %1794 = vmatpush1.msra.mxu0 %v1770
    %1795 = vmatprep.subr.mxu0 0.0
    %1796 = vmatpush1.msra.mxu0 %v1771
    %1797 = vmatprep.subr.mxu0 0.0
    %1798 = vmatpush1.msra.mxu0 %v1772
    %1799 = vmatprep.subr.mxu0 0.0
    %1800 = vmatpush1.msra.mxu0 %v1773
    %1801 = vmatprep.subr.mxu0 0.0
    %1802 = vmatpush1.msra.mxu0 %v1774
    %1803 = vmatprep.subr.mxu0 0.0
    %1804 = vmatpush1.msra.mxu0 %v1775
    %1805 = vmatprep.subr.mxu0 0.0
    %1806 = vmatpush1.msra.mxu0 %v1776
    %1807 = vmatprep.subr.mxu0 0.0
    %1808 = vmatpush1.msra.mxu0 %v1777
    %1809 = vmatprep.subr.mxu0 0.0
    %1810 = vmatpush1.msra.mxu0 %v1778
    %1811 = vmatprep.subr.mxu0 0.0
    %1812 = vmatpush1.msra.mxu0 %v1779
    %1813 = vmatprep.subr.mxu0 0.0
    %1814 = vmatpush1.msra.mxu0 %v1780
    %1815 = vmatprep.subr.mxu0 0.0
    %1816 = vmatpush1.msra.mxu0 %v1781
    %1817 = vmatprep.subr.mxu0 0.0
    %1818 = vmatpush1.msra.mxu0 %v1782
    %1819 = vmatprep.subr.mxu0 0.0
    %1820 = vmatpush1.msra.mxu0 0.0
    %1821 = vmatprep.subr.mxu0 0.0
    %1822 = vmatpush1.msra.mxu0 0.0
    %1823 = vmatprep.subr.mxu0 0.0
    %1824 = vmatpush1.msra.mxu0 0.0
    %1825 = vmatprep.subr.mxu0 0.0
    %1826 = vmatpush1.msra.mxu0 0.0
    %1827 = vmatprep.subr.mxu0 0.0
    %1828 = vmatpush1.msra.mxu0 0.0
    %1829 = vmatprep.subr.mxu0 0.0
    %1830 = vmatpush1.msra.mxu0 0.0
    %1831 = vmatprep.subr.mxu0 0.0
    %1832 = vmatpush1.msra.mxu0 0.0
    %1833 = vmatprep.subr.mxu0 0.0
    %1834 = vmatpush1.msra.mxu0 0.0
    %1835 = vmatprep.subr.mxu0 0.0
    %1836 = vmatpush1.msra.mxu0 0.0
    %1837 = vmatprep.subr.mxu0 0.0
    %1838 = vmatpush1.msra.mxu0 0.0
    %1839 = vmatprep.subr.mxu0 0.0
    %1840 = vmatpush1.msra.mxu0 0.0
    %1841 = vmatprep.subr.mxu0 0.0
    %1842 = vmatpush1.msra.mxu0 0.0
    %1843 = vmatprep.subr.mxu0 0.0
    %1844 = vmatpush1.msra.mxu0 0.0
    %1845 = vmatprep.subr.mxu0 0.0
    %1846 = vmatpush1.msra.mxu0 0.0
    %1847 = vmatprep.subr.mxu0 0.0
    %1848 = vmatpush1.msra.mxu0 0.0
    %1849 = vmatprep.subr.mxu0 0.0
    %1850 = vmatpush1.msra.mxu0 0.0
    %1851 = vmatprep.mubr.f32.mxu0 0.0
    %1852 = vmatmul.mubr.f32.gmra.mrb[0].mxu0 %v1765
    %v1853 = vpop.f32.mrb[0].mxu0
    %v1854 = vadd.f32 %v1786, %v1853
    %v1855 = vpop.f32.mrb[0].mxu0
    %1856 = vmatprep.mubr.f32.mxu0 0.0
    %1857 = vmatmul.mubr.f32.gmra.mrb[0].mxu0 %v1766
    %v1858 = vpop.f32.mrb[0].mxu0
    %v1859 = vadd.f32 %v1786, %v1858
    %v1860 = vpop.f32.mrb[0].mxu0
    %1861 = vdwg.mxu0
    %v1862 = vadd.f32 %v1622, %v1854
    %v1863 = vadd.f32 %v1623, %v1859
    %1864 = vst.msk [vmem:[#allocation2] sm:$0xff] %vm27, %v1862
    %1865 = vst.msk [vmem:[#allocation2 + $0x8] sm:$0xff] %vm27, %v1863
    // Predicated region
    $region26: #{transformer_block.1} parent=1 // pred_check
      _
    $region27: #{transformer_block.1} parent=1 // pred_check_branch
      %1867 = sbr.rel (0) target = $region29
    $region28: #{transformer_block.1} parent=1 // pred_region
      %s1869 = ssub.s32 256, 256
      %1870 = vsyncadd [#allocation3], %s1869
      %s1871 = sshll.u32 [#allocation2], 4
      %s1872 = int_to_ptr.vmem [resolvable:$true] %s1871
      %1877 = dma.vmem_to_hbm [thread:$0]  %s1872, 256, %s6, [#allocation3], 128, 128, 8
    $region29: #{transformer_block.1} parent=1 // pred_fallthru
      _
    // Predicated region
    $region30: #{transformer_block.1} parent=1 // pred_check
      _
    $region31: #{transformer_block.1} parent=1 // pred_check_branch
      %1879 = sbr.rel (0) target = $region33
    $region32: #{transformer_block.1} parent=1 // pred_region
      %1880 = dma.done [#allocation3], 256
    $region33: #{transformer_block.1} parent=1 // pred_fallthru
      _
    %1881 = vsyncpa [#allocation3], 1

</llo_original>
